<compile_context>
chip_gen: v7x
topology: tpu7x:2x2x1
jax: 0.10.0
libtpu: 0.0.40
codegen_flags: <defaults>
</compile_context>

<pallas_src>
import math

import jax
import jax.numpy as jnp
from jax.experimental import pallas as pl
from jax.experimental.pallas import tpu as pltpu


def _union_rgcn_kernel(dst_ref, efeat_ref, norm_ref, h_ref, prevh_ref,
                       wn_ref, wl_ref, ws_ref, bias_ref, out_ref, acc_ref):
    i = pl.program_id(0)            # node-tile index
    k = pl.program_id(1)            # edge-tile (reduction) index
    tn = acc_ref.shape[0]
    te = efeat_ref.shape[0]

    @pl.when(k == 0)
    def _init():
        acc_ref[...] = jnp.zeros_like(acc_ref)

    # Build the (tn, te) 0/1 incidence tile in-register from the dst indices
    # of this edge tile (padded edges carry dst = -1 and never match).
    row_ids = i * tn + jax.lax.broadcasted_iota(jnp.int32, (tn, te), 0)
    adj = (row_ids == dst_ref[...]).astype(jnp.bfloat16)        # exact 0/1

    # Scatter-sum of the composed edge features onto dst nodes as an MXU
    # matmul, accumulated in f32 across the E grid axis.
    acc_ref[...] += jnp.dot(adj, efeat_ref[...],
                            preferred_element_type=jnp.float32)

    @pl.when(k == pl.num_programs(1) - 1)
    def _finalize():
        # Neighbor matmul hoisted out of the edge loop (linearity), then norm.
        h_agg = jnp.dot(acc_ref[...], wn_ref[...],
                        preferred_element_type=jnp.float32) * norm_ref[...]
        # Self-loop message.
        loop = jnp.dot(h_ref[...], wl_ref[...],
                       preferred_element_type=jnp.float32)
        # Skip-connection gate.
        prev = prevh_ref[...]
        gate = jnp.dot(prev.astype(jnp.bfloat16), ws_ref[...],
                       preferred_element_type=jnp.float32) + bias_ref[...]
        skip_w = jax.nn.sigmoid(gate)
        node_repr = skip_w * (h_agg + loop) + (1.0 - skip_w) * prev
        # activation = relu ; dropout = 0.0 -> identity
        out_ref[...] = jnp.maximum(node_repr, 0.0).astype(out_ref.dtype)


def _pad2d(x, rows, cols):
    return jnp.pad(x, ((0, rows - x.shape[0]), (0, cols - x.shape[1])))


def union_rgcn_forward(h, prev_h, rel_emb, src, dst, etype, norm,
                       weight_neighbor, loop_weight,
                       skip_connect_weight, skip_connect_bias,
                       comp="sub", tn=128, te=512):
    """h: [N, F] node features, prev_h: [N, F], rel_emb: [R, F],
    src/dst/etype: [E] int32, norm: [N, 1]."""
    N, F = h.shape
    E = src.shape[0]

    # Lane-dense feature axis, tile-aligned node/edge axes.
    Fp = int(pl.cdiv(F, 128)) * 128
    Np = int(pl.cdiv(N, tn)) * tn
    Ep = int(pl.cdiv(E, te)) * te

    # Glue: data-dependent gathers + compose (msg_func input) in plain JAX,
    # cast once to bf16 so the kernel streams half the bytes.
    h_src = h[src]                                   # [E, F]
    rel_e = rel_emb[etype]                           # [E, F]
    if comp == "sub":        # NB: 'sub' in the reference code is an addition
        edge_feat = h_src + rel_e
    else:                    # 'mult'
        edge_feat = h_src * rel_e

    efeat_p = _pad2d(edge_feat, Ep, Fp).astype(jnp.bfloat16)
    dst_p = jnp.pad(dst.astype(jnp.int32), (0, Ep - E),
                    constant_values=-1).reshape(1, Ep)
    norm_p = _pad2d(norm.astype(jnp.float32), Np, 1)
    h_p = _pad2d(h, Np, Fp).astype(jnp.bfloat16)
    prev_p = _pad2d(prev_h, Np, Fp).astype(jnp.float32)
    wn_p = _pad2d(weight_neighbor, Fp, Fp).astype(jnp.float32)
    wl_p = _pad2d(loop_weight, Fp, Fp).astype(jnp.bfloat16)
    ws_p = _pad2d(skip_connect_weight, Fp, Fp).astype(jnp.bfloat16)
    b_p = _pad2d(skip_connect_bias.reshape(1, F), 1, Fp).astype(jnp.float32)

    grid = (Np // tn, Ep // te)

    bytes_accessed = int(efeat_p.nbytes + dst_p.nbytes + norm_p.nbytes
                         + h_p.nbytes + prev_p.nbytes + wn_p.nbytes
                         + wl_p.nbytes + ws_p.nbytes + b_p.nbytes
                         + Np * Fp * 4)
    cost = pl.CostEstimate(
        flops=int(2 * Np * Ep * Fp + 3 * 2 * Np * Fp * Fp),
        transcendentals=int(Np * Fp),
        bytes_accessed=bytes_accessed,
    )

    out_p = pl.pallas_call(
        _union_rgcn_kernel,
        out_shape=jax.ShapeDtypeStruct((Np, Fp), jnp.float32),
        grid_spec=pltpu.PrefetchScalarGridSpec(
            num_scalar_prefetch=0,
            grid=grid,
            in_specs=[
                pl.BlockSpec((1, te), lambda i, k: (0, k)),    # dst indices
                pl.BlockSpec((te, Fp), lambda i, k: (k, 0)),   # edge features
                pl.BlockSpec((tn, 1), lambda i, k: (i, 0)),    # norm
                pl.BlockSpec((tn, Fp), lambda i, k: (i, 0)),   # h
                pl.BlockSpec((tn, Fp), lambda i, k: (i, 0)),   # prev_h
                pl.BlockSpec((Fp, Fp), lambda i, k: (0, 0)),   # W_neighbor
                pl.BlockSpec((Fp, Fp), lambda i, k: (0, 0)),   # loop_weight
                pl.BlockSpec((Fp, Fp), lambda i, k: (0, 0)),   # skip weight
                pl.BlockSpec((1, Fp), lambda i, k: (0, 0)),    # skip bias
            ],
            out_specs=pl.BlockSpec((tn, Fp), lambda i, k: (i, 0)),
            scratch_shapes=[pltpu.VMEM((tn, Fp), jnp.float32)],
        ),
        compiler_params=pltpu.CompilerParams(
            dimension_semantics=("parallel", "arbitrary"),
            vmem_limit_bytes=32 * 1024 * 1024,
        ),
        cost_estimate=cost,
    )(dst_p, efeat_p, norm_p, h_p, prev_p, wn_p, wl_p, ws_p, b_p)

    return out_p[:N, :F]


def _xavier_uniform(key, shape, gain):
    fan_in, fan_out = shape
    bound = gain * math.sqrt(6.0 / (fan_in + fan_out))
    return jax.random.uniform(key, shape, jnp.float32, -bound, bound)


def _reference(h, prev_h, rel_emb, src, dst, etype, norm,
               wn, wl, ws, bs, comp="sub"):
    """Pure-JAX reference mimicking the kernel's bf16 MXU-input rounding
    (f32 accumulation), so tolerances stay tight."""
    bf = lambda x: x.astype(jnp.bfloat16).astype(jnp.float32)
    h_src = h[src]
    rel_e = rel_emb[etype]
    edge_feat = h_src + rel_e if comp == "sub" else h_src * rel_e
    edge_feat = bf(edge_feat)
    agg = jax.ops.segment_sum(edge_feat, dst, num_segments=h.shape[0])
    h_agg = (agg @ wn) * norm
    loop = bf(h) @ bf(wl)
    skip_w = jax.nn.sigmoid(bf(prev_h) @ bf(ws) + bs)
    node_repr = skip_w * (h_agg + loop) + (1.0 - skip_w) * prev_h
    return jnp.maximum(node_repr, 0.0)


if __name__ == "__main__":
    # Small synthetic graph: in_feat == out_feat (the reference msg_func views
    # src features as out_feat, so the layer implicitly requires this).
    N, E, R, F = 200, 900, 11, 48
    gain = math.sqrt(2.0)  # nn.init.calculate_gain('relu')

    key = jax.random.PRNGKey(0)
    k = jax.random.split(key, 10)

    h = jax.random.normal(k[0], (N, F), jnp.float32)
    prev_h = jax.random.normal(k[1], (N, F), jnp.float32)
    rel_emb = jax.random.normal(k[2], (R, F), jnp.float32)
    src = jax.random.randint(k[3], (E,), 0, N, jnp.int32)
    dst = jax.random.randint(k[4], (E,), 0, N, jnp.int32)
    etype = jax.random.randint(k[5], (E,), 0, R, jnp.int32)
    # norm = 1 / in-degree (clamped to >= 1), as DGL typically supplies
    deg = jax.ops.segment_sum(jnp.ones((E,), jnp.float32), dst, num_segments=N)
    norm = (1.0 / jnp.maximum(deg, 1.0)).reshape(N, 1)

    weight_neighbor = _xavier_uniform(k[6], (F, F), gain)
    loop_weight = _xavier_uniform(k[7], (F, F), gain)
    # evolve_loop_weight is defined in __init__ but unused in forward()
    skip_connect_weight = _xavier_uniform(k[8], (F, F), gain)
    skip_connect_bias = jnp.zeros((F,), jnp.float32)
    # TODO(synk): dropout path omitted (dropout=0.0 in this instantiation)

    out = union_rgcn_forward(h, prev_h, rel_emb, src, dst, etype, norm,
                             weight_neighbor, loop_weight,
                             skip_connect_weight, skip_connect_bias,
                             comp="sub")
    out = jax.block_until_ready(out)

    ref = _reference(h, prev_h, rel_emb, src, dst, etype, norm,
                     weight_neighbor, loop_weight,
                     skip_connect_weight, skip_connect_bias, comp="sub")
    assert out.shape == ref.shape, "shape mismatch vs reference"
    assert jnp.allclose(out, ref, atol=1e-3, rtol=1e-3), "mismatch vs reference"
    print("KERNEL_OK")
</pallas_src>

<mosaic_0001>
module attributes {stable_mosaic.version = 11 : i64} {
  func.func @_union_rgcn_kernel(%arg0: i32, %arg1: i32, %arg2: memref<1x512xi32, #tpu.memory_space<vmem>>, %arg3: memref<512x128xbf16, #tpu.memory_space<vmem>>, %arg4: memref<128x1xf32, #tpu.memory_space<vmem>>, %arg5: memref<128x128xbf16, #tpu.memory_space<vmem>>, %arg6: memref<128x128xf32, #tpu.memory_space<vmem>>, %arg7: memref<128x128xf32, #tpu.memory_space<vmem>>, %arg8: memref<128x128xbf16, #tpu.memory_space<vmem>>, %arg9: memref<128x128xbf16, #tpu.memory_space<vmem>>, %arg10: memref<1x128xf32, #tpu.memory_space<vmem>>, %arg11: memref<128x128xf32, #tpu.memory_space<vmem>>, %arg12: memref<128x128xf32, #tpu.memory_space<vmem>>) attributes {dimension_semantics = [#tpu.dimension_semantics<parallel>, #tpu.dimension_semantics<arbitrary>], iteration_bounds = array<i64: 2, 2>, scalar_prefetch = 0 : i64, scratch_operands = 1 : i64, tpu.core_type = #tpu.core_type<tc>, window_params = [{transform_indices = @transform_0, window_bounds = array<i64: 1, 512>}, {transform_indices = @transform_1, window_bounds = array<i64: 512, 128>}, {transform_indices = @transform_2, window_bounds = array<i64: 128, 1>}, {transform_indices = @transform_3, window_bounds = array<i64: 128, 128>}, {transform_indices = @transform_4, window_bounds = array<i64: 128, 128>}, {pipeline_mode = #tpu.pipeline_mode<synchronous>, transform_indices = @transform_5, window_bounds = array<i64: 128, 128>}, {pipeline_mode = #tpu.pipeline_mode<synchronous>, transform_indices = @transform_6, window_bounds = array<i64: 128, 128>}, {pipeline_mode = #tpu.pipeline_mode<synchronous>, transform_indices = @transform_7, window_bounds = array<i64: 128, 128>}, {pipeline_mode = #tpu.pipeline_mode<synchronous>, transform_indices = @transform_8, window_bounds = array<i64: 1, 128>}, {transform_indices = @transform_9, window_bounds = array<i64: 128, 128>}]} {
    %c0_i32 = arith.constant 0 : i32
    %0 = arith.cmpi eq, %arg1, %c0_i32 : i32
    %1 = arith.extui %0 : i1 to i32
    %c0_i32_0 = arith.constant 0 : i32
    %2 = arith.cmpi ne, %1, %c0_i32_0 : i32
    scf.if %2 {
      %cst_9 = arith.constant 0.000000e+00 : f32
      %21 = vector.broadcast %cst_9 : f32 to vector<128x128xf32>
      %c0_10 = arith.constant 0 : index
      %c0_11 = arith.constant 0 : index
      %22 = vector.load %arg12[%c0_10, %c0_11] : memref<128x128xf32, #tpu.memory_space<vmem>>, vector<128x128xf32>
      tpu.vector_store %arg12[%c0_10, %c0_11], %21 {strides = array<i32>} : memref<128x128xf32, #tpu.memory_space<vmem>>, vector<128x128xf32>,
    } else {
    }
    %c128_i32 = arith.constant 128 : i32
    %3 = arith.muli %arg0, %c128_i32 : i32
    %4 = tpu.iota {dimensions = array<i32: 0>} : vector<128x512xi32>
    %5 = vector.broadcast %3 : i32 to vector<128x512xi32>
    %6 = arith.addi %5, %4 : vector<128x512xi32>
    %c0 = arith.constant 0 : index
    %c0_1 = arith.constant 0 : index
    %7 = vector.load %arg2[%c0, %c0_1] : memref<1x512xi32, #tpu.memory_space<vmem>>, vector<1x512xi32>
    %8 = vector.broadcast %7 : vector<1x512xi32> to vector<128x512xi32>
    %9 = arith.cmpi eq, %6, %8 : vector<128x512xi32>
    %10 = arith.extui %9 : vector<128x512xi1> to vector<128x512xi32>
    %11 = arith.sitofp %10 : vector<128x512xi32> to vector<128x512xf32>
    %12 = arith.truncf %11 : vector<128x512xf32> to vector<128x512xbf16>
    %c0_2 = arith.constant 0 : index
    %c0_3 = arith.constant 0 : index
    %13 = vector.load %arg12[%c0_2, %c0_3] : memref<128x128xf32, #tpu.memory_space<vmem>>, vector<128x128xf32>
    %c0_4 = arith.constant 0 : index
    %c0_5 = arith.constant 0 : index
    %14 = vector.load %arg3[%c0_4, %c0_5] : memref<512x128xbf16, #tpu.memory_space<vmem>>, vector<512x128xbf16>
    %cst = arith.constant dense<0.000000e+00> : vector<128x128xf32>
    %15 = tpu.matmul %12, %14, %cst {dimension_numbers = #tpu.dot_dimension_numbers<[1], [0], [0], [1], [0, 0, 1, 1], [], []>} : vector<128x512xbf16>, vector<512x128xbf16>, vector<128x128xf32> -> vector<128x128xf32>
    %16 = arith.addf %13, %15 : vector<128x128xf32>
    %c0_6 = arith.constant 0 : index
    %c0_7 = arith.constant 0 : index
    %17 = vector.load %arg12[%c0_6, %c0_7] : memref<128x128xf32, #tpu.memory_space<vmem>>, vector<128x128xf32>
    tpu.vector_store %arg12[%c0_6, %c0_7], %16 {strides = array<i32>} : memref<128x128xf32, #tpu.memory_space<vmem>>, vector<128x128xf32>,
    %c1_i32 = arith.constant 1 : i32
    %18 = arith.cmpi eq, %arg1, %c1_i32 : i32
    %19 = arith.extui %18 : i1 to i32
    %c0_i32_8 = arith.constant 0 : i32
    %20 = arith.cmpi ne, %19, %c0_i32_8 : i32
    scf.if %20 {
      %c0_9 = arith.constant 0 : index
      %c0_10 = arith.constant 0 : index
      %21 = vector.load %arg12[%c0_9, %c0_10] : memref<128x128xf32, #tpu.memory_space<vmem>>, vector<128x128xf32>
      %c0_11 = arith.constant 0 : index
      %c0_12 = arith.constant 0 : index
      %22 = vector.load %arg7[%c0_11, %c0_12] : memref<128x128xf32, #tpu.memory_space<vmem>>, vector<128x128xf32>
      %cst_13 = arith.constant dense<0.000000e+00> : vector<128x128xf32>
      %23 = tpu.matmul %21, %22, %cst_13 {dimension_numbers = #tpu.dot_dimension_numbers<[1], [0], [0], [1], [0, 0, 1, 1], [], []>} : vector<128x128xf32>, vector<128x128xf32>, vector<128x128xf32> -> vector<128x128xf32>
      %c0_14 = arith.constant 0 : index
      %c0_15 = arith.constant 0 : index
      %24 = vector.load %arg4[%c0_14, %c0_15] : memref<128x1xf32, #tpu.memory_space<vmem>>, vector<128x1xf32>
      %25 = vector.broadcast %24 : vector<128x1xf32> to vector<128x128xf32>
      %26 = arith.mulf %23, %25 : vector<128x128xf32>
      %c0_16 = arith.constant 0 : index
      %c0_17 = arith.constant 0 : index
      %27 = vector.load %arg5[%c0_16, %c0_17] : memref<128x128xbf16, #tpu.memory_space<vmem>>, vector<128x128xbf16>
      %c0_18 = arith.constant 0 : index
      %c0_19 = arith.constant 0 : index
      %28 = vector.load %arg8[%c0_18, %c0_19] : memref<128x128xbf16, #tpu.memory_space<vmem>>, vector<128x128xbf16>
      %cst_20 = arith.constant dense<0.000000e+00> : vector<128x128xf32>
      %29 = tpu.matmul %27, %28, %cst_20 {dimension_numbers = #tpu.dot_dimension_numbers<[1], [0], [0], [1], [0, 0, 1, 1], [], []>} : vector<128x128xbf16>, vector<128x128xbf16>, vector<128x128xf32> -> vector<128x128xf32>
      %c0_21 = arith.constant 0 : index
      %c0_22 = arith.constant 0 : index
      %30 = vector.load %arg6[%c0_21, %c0_22] : memref<128x128xf32, #tpu.memory_space<vmem>>, vector<128x128xf32>
      %31 = arith.truncf %30 : vector<128x128xf32> to vector<128x128xbf16>
      %c0_23 = arith.constant 0 : index
      %c0_24 = arith.constant 0 : index
      %32 = vector.load %arg9[%c0_23, %c0_24] : memref<128x128xbf16, #tpu.memory_space<vmem>>, vector<128x128xbf16>
      %cst_25 = arith.constant dense<0.000000e+00> : vector<128x128xf32>
      %33 = tpu.matmul %31, %32, %cst_25 {dimension_numbers = #tpu.dot_dimension_numbers<[1], [0], [0], [1], [0, 0, 1, 1], [], []>} : vector<128x128xbf16>, vector<128x128xbf16>, vector<128x128xf32> -> vector<128x128xf32>
      %c0_26 = arith.constant 0 : index
      %c0_27 = arith.constant 0 : index
      %34 = vector.load %arg10[%c0_26, %c0_27] : memref<1x128xf32, #tpu.memory_space<vmem>>, vector<1x128xf32>
      %35 = vector.broadcast %34 : vector<1x128xf32> to vector<128x128xf32>
      %36 = arith.addf %33, %35 : vector<128x128xf32>
      %37 = arith.negf %36 : vector<128x128xf32>
      %38 = math.exp %37 : vector<128x128xf32>
      %cst_28 = arith.constant 1.000000e+00 : f32
      %39 = vector.broadcast %cst_28 : f32 to vector<128x128xf32>
      %40 = arith.addf %39, %38 : vector<128x128xf32>
      %41 = arith.divf %39, %40 : vector<128x128xf32>
      %42 = arith.addf %26, %29 : vector<128x128xf32>
      %43 = arith.mulf %41, %42 : vector<128x128xf32>
      %cst_29 = arith.constant 1.000000e+00 : f32
      %44 = vector.broadcast %cst_29 : f32 to vector<128x128xf32>
      %45 = arith.subf %44, %41 : vector<128x128xf32>
      %46 = arith.mulf %45, %30 : vector<128x128xf32>
      %47 = arith.addf %43, %46 : vector<128x128xf32>
      %cst_30 = arith.constant 0.000000e+00 : f32
      %48 = vector.broadcast %cst_30 : f32 to vector<128x128xf32>
      %49 = arith.maximumf %47, %48 : vector<128x128xf32>
      %c0_31 = arith.constant 0 : index
      %c0_32 = arith.constant 0 : index
      %50 = vector.load %arg11[%c0_31, %c0_32] : memref<128x128xf32, #tpu.memory_space<vmem>>, vector<128x128xf32>
      tpu.vector_store %arg11[%c0_31, %c0_32], %49 {strides = array<i32>} : memref<128x128xf32, #tpu.memory_space<vmem>>, vector<128x128xf32>,
    } else {
    }
    return
  }
  func.func @transform_0(%arg0: i32, %arg1: i32) -> (i32, i32) {
    %c0_i32 = arith.constant 0 : i32
    %c0_i32_0 = arith.constant 0 : i32
    return %c0_i32, %arg1 : i32, i32
  }
  func.func @transform_1(%arg0: i32, %arg1: i32) -> (i32, i32) {
    %c0_i32 = arith.constant 0 : i32
    %c0_i32_0 = arith.constant 0 : i32
    return %arg1, %c0_i32 : i32, i32
  }
  func.func @transform_2(%arg0: i32, %arg1: i32) -> (i32, i32) {
    %c0_i32 = arith.constant 0 : i32
    %c0_i32_0 = arith.constant 0 : i32
    return %arg0, %c0_i32 : i32, i32
  }
  func.func @transform_3(%arg0: i32, %arg1: i32) -> (i32, i32) {
    %c0_i32 = arith.constant 0 : i32
    %c0_i32_0 = arith.constant 0 : i32
    return %arg0, %c0_i32 : i32, i32
  }
  func.func @transform_4(%arg0: i32, %arg1: i32) -> (i32, i32) {
    %c0_i32 = arith.constant 0 : i32
    %c0_i32_0 = arith.constant 0 : i32
    return %arg0, %c0_i32 : i32, i32
  }
  func.func @transform_5(%arg0: i32, %arg1: i32) -> (i32, i32) {
    %c0_i32 = arith.constant 0 : i32
    %c0_i32_0 = arith.constant 0 : i32
    %c0_i32_1 = arith.constant 0 : i32
    return %c0_i32, %c0_i32_0 : i32, i32
  }
  func.func @transform_6(%arg0: i32, %arg1: i32) -> (i32, i32) {
    %c0_i32 = arith.constant 0 : i32
    %c0_i32_0 = arith.constant 0 : i32
    %c0_i32_1 = arith.constant 0 : i32
    return %c0_i32, %c0_i32_0 : i32, i32
  }
  func.func @transform_7(%arg0: i32, %arg1: i32) -> (i32, i32) {
    %c0_i32 = arith.constant 0 : i32
    %c0_i32_0 = arith.constant 0 : i32
    %c0_i32_1 = arith.constant 0 : i32
    return %c0_i32, %c0_i32_0 : i32, i32
  }
  func.func @transform_8(%arg0: i32, %arg1: i32) -> (i32, i32) {
    %c0_i32 = arith.constant 0 : i32
    %c0_i32_0 = arith.constant 0 : i32
    %c0_i32_1 = arith.constant 0 : i32
    return %c0_i32, %c0_i32_0 : i32, i32
  }
  func.func @transform_9(%arg0: i32, %arg1: i32) -> (i32, i32) {
    %c0_i32 = arith.constant 0 : i32
    %c0_i32_0 = arith.constant 0 : i32
    return %arg0, %c0_i32 : i32, i32
  }
}

</mosaic_0001>

<llo_original>
// kernel: tpu_custom_call.1
$region0: #{tpu_custom_call.1}
  #allocation0 [shape = 'u32[]', space=smem, size = 0x4, offset = 0x4, fixed_abs, tag = 'smem constant byte address 0x4 - core index']
  #allocation1 [shape = 'u32[144,128]{1,0:T(1,128)}', space=vmem, size = 0x12000, scoped, tag = 'internal scratch']
  #allocation2 [shape = 'f32[128,128]{1,0:T(8,128)}', space=vmem, size = 0x10000, scoped, tag = 'scratch operand']
  %s0 = inlined_call_operand.vmem [shape: s32[1,1024], index: 0, kind: input, shape index: {}]
  %s1 = inlined_call_operand.hbm [shape: bf16[1024,128], index: 1, kind: input, shape index: {}]
  %s2 = inlined_call_operand.vmem [shape: f32[256,1], index: 2, kind: input, shape index: {}]
  %s3 = inlined_call_operand.hbm [shape: bf16[256,128], index: 3, kind: input, shape index: {}]
  %s4 = inlined_call_operand.vmem [shape: f32[256,128], index: 4, kind: input, shape index: {}]
  %s5 = inlined_call_operand.hbm [shape: f32[128,128], index: 5, kind: input, shape index: {}]
  %s6 = inlined_call_operand.hbm [shape: bf16[128,128], index: 6, kind: input, shape index: {}]
  %s7 = inlined_call_operand.hbm [shape: bf16[128,128], index: 7, kind: input, shape index: {}]
  %s8 = inlined_call_operand.vmem [shape: f32[1,128], index: 8, kind: input, shape index: {}]
  %s9 = inlined_call_operand.hbm [shape: f32[256,128], index: 9, kind: output, shape index: {}]
  %s10 = sld [smem:[#allocation0]]
  $region97: #{tpu_custom_call.1} parent=0
    _
  %s12 = ssub.s32 1, %s10
  %s13 = scalar_select 0, %s12, %s10
  $region1: #{tpu_custom_call.1} parent=0
    #allocation3 [shape = 'u8[262144]{0}', space=vmem, size = 0x40000, scoped, tag = 'input window, operand 1']
    #allocation4 [shape = 's32[2]{0}', space=sflag, size = 0x8, scoped, tag = 'scoped memory for tpu_custom_call.1']
    #allocation5 [shape = 's32[2]{0}', space=sflag, size = 0x8, scoped, tag = 'scoped memory for tpu_custom_call.1']
    #allocation6 [shape = 'u8[65536]{0}', space=vmem, size = 0x10000, scoped, tag = 'input window, operand 3']
    #allocation7 [shape = 's32[2]{0}', space=sflag, size = 0x8, scoped, tag = 'scoped memory for tpu_custom_call.1']
    #allocation8 [shape = 'u8[65536]{0}', space=vmem, size = 0x10000, scoped, tag = 'input window, operand 5, single buffered']
    #allocation9 [shape = 'u8[32768]{0}', space=vmem, size = 0x8000, scoped, tag = 'input window, operand 6, single buffered']
    #allocation10 [shape = 's32[1]{0}', space=sflag, size = 0x4, scoped, tag = 'scoped memory for tpu_custom_call.1']
    #allocation11 [shape = 'u8[32768]{0}', space=vmem, size = 0x8000, scoped, tag = 'input window, operand 7, single buffered']
    #allocation12 [shape = 'u8[131072]{0}', space=vmem, size = 0x20000, scoped, tag = 'output window, operand 0']
    %14 = vsyncpa [#allocation4], 0
    %s15 = scalar_lea.sflag [#allocation4], 1
    %16 = vsyncpa %s15, 0
    %17 = vsyncpa [#allocation7], 0
    %s18 = scalar_lea.sflag [#allocation7], 1
    %19 = vsyncpa %s18, 0
    %20 = vsyncpa [#allocation10], 0
    %21 = vsyncpa [#allocation5], 0
    %s22 = scalar_lea.sflag [#allocation5], 1
    %23 = vsyncpa %s22, 0
    loop: start=0, step=1, limit=6
    $region2: #{tpu_custom_call.1} parent=1 // loop_pre_header
      _
    $region3: #{tpu_custom_call.1} parent=1 // loop_header
      %s25 = sphi 0, %s29
      %p26 = scmp.ge.s32.totalorder %s25, 6
      %s32 = sphi 0, %s44
      %s33 = sphi 0, %s40
      %s34 = sphi 0, %s32
      %s35 = sphi 0, %s33
      %s36 = sphi 0, %s34
      %s37 = sphi 0, %s35
      %s47 = sphi 0, %s49
      %s50 = sphi 0, %s47
      %s51 = sphi 0, %s50
      %s67 = sphi 0, %s51
      %s73 = sphi 0, %s75
      %s76 = sphi 0, %s73
      %s77 = sphi 0, %s76
      %s93 = sphi 0, %s77
      %s99 = sphi 0, %s101
      %s102 = sphi 0, %s99
      %s103 = sphi 0, %s102
      %s119 = sphi 0, %s103
      %s125 = sphi 0, %s127
      %s128 = sphi 0, %s125
      %s129 = sphi 0, %s128
      %s145 = sphi 0, %s129
      %s151 = sphi 0, %s153
      %s154 = sphi 0, %s151
      %s155 = sphi 0, %s154
      %s171 = sphi 0, %s155
      %s175 = sphi 0, %s175
      %s177 = sphi 0, %s175
      %s178 = sphi 0, %s177
      %s192 = sphi 0, %s178
      %s196 = sphi 0, %s196
      %s198 = sphi 0, %s196
      %s199 = sphi 0, %s198
      %s213 = sphi 0, %s199
      %s217 = sphi 0, %s217
      %s219 = sphi 0, %s217
      %s220 = sphi 0, %s219
      %s234 = sphi 0, %s220
      %s238 = sphi 0, %s238
      %s240 = sphi 0, %s238
      %s241 = sphi 0, %s240
      %s255 = sphi 0, %s241
      %s261 = sphi 0, %s263
      %s264 = sphi 0, %s261
      %s265 = sphi 0, %s264
      %s281 = sphi 0, %s265
    $region4: #{tpu_custom_call.1} parent=1 // loop_header_branch
      %28 = sbr.rel (%p26) target = $region8
    $region5: #{tpu_custom_call.1} parent=1 // loop_body
      %s30 = ssub.s32 %s25, 1
      %s31 = ssub.s32 %s25, 2
      %s38 = sadd.s32 1, %s33
      %p39 = scmp.ge.s32.totalorder %s38, 2
      %s40 = scalar_select %p39, 0, %s38
      %s41 = sadd.s32 1, %s32
      %s42 = scalar_select %p39, %s41, %s32
      %p43 = scmp.ge.s32.totalorder %s42, 2
      %s44 = scalar_select %p43, 0, %s42
      %s45 = ssub.s32 %s33, %s40
      %p46 = scmp.eq.s32.totalorder %s45, 0
      %s48 = sadd.s32 %s47, 1
      %s49 = scalar_select %p46, %s47, %s48
      %p52 = pneg %p46
      %p53 = scmp.eq.s32.totalorder %s25, 3
      %p54 = por %p52, %p53
      %p55 = scmp.ne.s32.totalorder %s47, %s50
      %p56 = scmp.eq.s32.totalorder %s25, 0
      %p57 = por %p55, %p56
      %p58 = scmp.ne.s32.totalorder %s47, %s50
      %p59 = scmp.eq.s32.totalorder %s30, 3
      %p60 = por %p58, %p59
      %p61 = scmp.ne.s32.totalorder %s50, %s51
      %p62 = scmp.eq.s32.totalorder %s30, 0
      %p63 = por %p61, %p62
      %p64 = scmp.ne.s32.totalorder %s50, %s51
      %p65 = scmp.eq.s32.totalorder %s31, 3
      %p66 = por %p64, %p65
      %p68 = scmp.ne.s32.totalorder %s51, %s67
      %p69 = scmp.eq.s32.totalorder %s31, 0
      %p70 = por %p68, %p69
      %s71 = ssub.s32 %s33, %s40
      %p72 = scmp.eq.s32.totalorder %s71, 0
      %s74 = sadd.s32 %s73, 1
      %s75 = scalar_select %p72, %s73, %s74
      %p78 = pneg %p72
      %p79 = scmp.eq.s32.totalorder %s25, 3
      %p80 = por %p78, %p79
      %p81 = scmp.ne.s32.totalorder %s73, %s76
      %p82 = scmp.eq.s32.totalorder %s25, 0
      %p83 = por %p81, %p82
      %p84 = scmp.ne.s32.totalorder %s73, %s76
      %p85 = scmp.eq.s32.totalorder %s30, 3
      %p86 = por %p84, %p85
      %p87 = scmp.ne.s32.totalorder %s76, %s77
      %p88 = scmp.eq.s32.totalorder %s30, 0
      %p89 = por %p87, %p88
      %p90 = scmp.ne.s32.totalorder %s76, %s77
      %p91 = scmp.eq.s32.totalorder %s31, 3
      %p92 = por %p90, %p91
      %p94 = scmp.ne.s32.totalorder %s77, %s93
      %p95 = scmp.eq.s32.totalorder %s31, 0
      %p96 = por %p94, %p95
      %s97 = ssub.s32 %s32, %s44
      %p98 = scmp.eq.s32.totalorder %s97, 0
      %s100 = sadd.s32 %s99, 1
      %s101 = scalar_select %p98, %s99, %s100
      %p104 = pneg %p98
      %p105 = scmp.eq.s32.totalorder %s25, 3
      %p106 = por %p104, %p105
      %p107 = scmp.ne.s32.totalorder %s99, %s102
      %p108 = scmp.eq.s32.totalorder %s25, 0
      %p109 = por %p107, %p108
      %p110 = scmp.ne.s32.totalorder %s99, %s102
      %p111 = scmp.eq.s32.totalorder %s30, 3
      %p112 = por %p110, %p111
      %p113 = scmp.ne.s32.totalorder %s102, %s103
      %p114 = scmp.eq.s32.totalorder %s30, 0
      %p115 = por %p113, %p114
      %p116 = scmp.ne.s32.totalorder %s102, %s103
      %p117 = scmp.eq.s32.totalorder %s31, 3
      %p118 = por %p116, %p117
      %p120 = scmp.ne.s32.totalorder %s103, %s119
      %p121 = scmp.eq.s32.totalorder %s31, 0
      %p122 = por %p120, %p121
      %s123 = ssub.s32 %s32, %s44
      %p124 = scmp.eq.s32.totalorder %s123, 0
      %s126 = sadd.s32 %s125, 1
      %s127 = scalar_select %p124, %s125, %s126
      %p130 = pneg %p124
      %p131 = scmp.eq.s32.totalorder %s25, 3
      %p132 = por %p130, %p131
      %p133 = scmp.ne.s32.totalorder %s125, %s128
      %p134 = scmp.eq.s32.totalorder %s25, 0
      %p135 = por %p133, %p134
      %p136 = scmp.ne.s32.totalorder %s125, %s128
      %p137 = scmp.eq.s32.totalorder %s30, 3
      %p138 = por %p136, %p137
      %p139 = scmp.ne.s32.totalorder %s128, %s129
      %p140 = scmp.eq.s32.totalorder %s30, 0
      %p141 = por %p139, %p140
      %p142 = scmp.ne.s32.totalorder %s128, %s129
      %p143 = scmp.eq.s32.totalorder %s31, 3
      %p144 = por %p142, %p143
      %p146 = scmp.ne.s32.totalorder %s129, %s145
      %p147 = scmp.eq.s32.totalorder %s31, 0
      %p148 = por %p146, %p147
      %s149 = ssub.s32 %s32, %s44
      %p150 = scmp.eq.s32.totalorder %s149, 0
      %s152 = sadd.s32 %s151, 1
      %s153 = scalar_select %p150, %s151, %s152
      %p156 = pneg %p150
      %p157 = scmp.eq.s32.totalorder %s25, 3
      %p158 = por %p156, %p157
      %p159 = scmp.ne.s32.totalorder %s151, %s154
      %p160 = scmp.eq.s32.totalorder %s25, 0
      %p161 = por %p159, %p160
      %p162 = scmp.ne.s32.totalorder %s151, %s154
      %p163 = scmp.eq.s32.totalorder %s30, 3
      %p164 = por %p162, %p163
      %p165 = scmp.ne.s32.totalorder %s154, %s155
      %p166 = scmp.eq.s32.totalorder %s30, 0
      %p167 = por %p165, %p166
      %p168 = scmp.ne.s32.totalorder %s154, %s155
      %p169 = scmp.eq.s32.totalorder %s31, 3
      %p170 = por %p168, %p169
      %p172 = scmp.ne.s32.totalorder %s155, %s171
      %p173 = scmp.eq.s32.totalorder %s31, 0
      %p174 = por %p172, %p173
      %s176 = sadd.s32 %s175, 1
      %p179 = scmp.eq.s32.totalorder %s25, 3
      %p180 = scmp.ne.s32.totalorder %s175, %s177
      %p181 = scmp.eq.s32.totalorder %s25, 0
      %p182 = por %p180, %p181
      %p183 = scmp.ne.s32.totalorder %s175, %s177
      %p184 = scmp.eq.s32.totalorder %s30, 3
      %p185 = por %p183, %p184
      %p186 = scmp.ne.s32.totalorder %s177, %s178
      %p187 = scmp.eq.s32.totalorder %s30, 0
      %p188 = por %p186, %p187
      %p189 = scmp.ne.s32.totalorder %s177, %s178
      %p190 = scmp.eq.s32.totalorder %s31, 3
      %p191 = por %p189, %p190
      %p193 = scmp.ne.s32.totalorder %s178, %s192
      %p194 = scmp.eq.s32.totalorder %s31, 0
      %p195 = por %p193, %p194
      %s197 = sadd.s32 %s196, 1
      %p200 = scmp.eq.s32.totalorder %s25, 3
      %p201 = scmp.ne.s32.totalorder %s196, %s198
      %p202 = scmp.eq.s32.totalorder %s25, 0
      %p203 = por %p201, %p202
      %p204 = scmp.ne.s32.totalorder %s196, %s198
      %p205 = scmp.eq.s32.totalorder %s30, 3
      %p206 = por %p204, %p205
      %p207 = scmp.ne.s32.totalorder %s198, %s199
      %p208 = scmp.eq.s32.totalorder %s30, 0
      %p209 = por %p207, %p208
      %p210 = scmp.ne.s32.totalorder %s198, %s199
      %p211 = scmp.eq.s32.totalorder %s31, 3
      %p212 = por %p210, %p211
      %p214 = scmp.ne.s32.totalorder %s199, %s213
      %p215 = scmp.eq.s32.totalorder %s31, 0
      %p216 = por %p214, %p215
      %s218 = sadd.s32 %s217, 1
      %p221 = scmp.eq.s32.totalorder %s25, 3
      %p222 = scmp.ne.s32.totalorder %s217, %s219
      %p223 = scmp.eq.s32.totalorder %s25, 0
      %p224 = por %p222, %p223
      %p225 = scmp.ne.s32.totalorder %s217, %s219
      %p226 = scmp.eq.s32.totalorder %s30, 3
      %p227 = por %p225, %p226
      %p228 = scmp.ne.s32.totalorder %s219, %s220
      %p229 = scmp.eq.s32.totalorder %s30, 0
      %p230 = por %p228, %p229
      %p231 = scmp.ne.s32.totalorder %s219, %s220
      %p232 = scmp.eq.s32.totalorder %s31, 3
      %p233 = por %p231, %p232
      %p235 = scmp.ne.s32.totalorder %s220, %s234
      %p236 = scmp.eq.s32.totalorder %s31, 0
      %p237 = por %p235, %p236
      %s239 = sadd.s32 %s238, 1
      %p242 = scmp.eq.s32.totalorder %s25, 3
      %p243 = scmp.ne.s32.totalorder %s238, %s240
      %p244 = scmp.eq.s32.totalorder %s25, 0
      %p245 = por %p243, %p244
      %p246 = scmp.ne.s32.totalorder %s238, %s240
      %p247 = scmp.eq.s32.totalorder %s30, 3
      %p248 = por %p246, %p247
      %p249 = scmp.ne.s32.totalorder %s240, %s241
      %p250 = scmp.eq.s32.totalorder %s30, 0
      %p251 = por %p249, %p250
      %p252 = scmp.ne.s32.totalorder %s240, %s241
      %p253 = scmp.eq.s32.totalorder %s31, 3
      %p254 = por %p252, %p253
      %p256 = scmp.ne.s32.totalorder %s241, %s255
      %p257 = scmp.eq.s32.totalorder %s31, 0
      %p258 = por %p256, %p257
      %s259 = ssub.s32 %s32, %s44
      %p260 = scmp.eq.s32.totalorder %s259, 0
      %s262 = sadd.s32 %s261, 1
      %s263 = scalar_select %p260, %s261, %s262
      %p266 = pneg %p260
      %p267 = scmp.eq.s32.totalorder %s25, 3
      %p268 = por %p266, %p267
      %p269 = scmp.ne.s32.totalorder %s261, %s264
      %p270 = scmp.eq.s32.totalorder %s25, 0
      %p271 = por %p269, %p270
      %p272 = scmp.ne.s32.totalorder %s261, %s264
      %p273 = scmp.eq.s32.totalorder %s30, 3
      %p274 = por %p272, %p273
      %p275 = scmp.ne.s32.totalorder %s264, %s265
      %p276 = scmp.eq.s32.totalorder %s30, 0
      %p277 = por %p275, %p276
      %p278 = scmp.ne.s32.totalorder %s264, %s265
      %p279 = scmp.eq.s32.totalorder %s31, 3
      %p280 = por %p278, %p279
      %p282 = scmp.ne.s32.totalorder %s265, %s281
      %p283 = scmp.eq.s32.totalorder %s31, 0
      %p284 = por %p282, %p283
      %p285 = scmp.le.s32.totalorder 1, %s25
      %p286 = scmp.lt.s32.totalorder %s25, 5
      %p287 = pnand %p285, %p286
      %p288 = pneg %p287
      // Predicated region
      $region9: #{tpu_custom_call.1} parent=5 // pred_check
        _
      $region10: #{tpu_custom_call.1} parent=5 // pred_check_branch
        %290 = sbr.rel (%p287) target = $region12
      $region11: #{tpu_custom_call.1} parent=5 // pred_region
        %s291 = ssub.s32 %s25, 1
        // Predicated region
        $region13: #{tpu_custom_call.1} parent=11 // pred_check
          %p292 = pneg %p188
        $region14: #{tpu_custom_call.1} parent=11 // pred_check_branch
          %294 = sbr.rel (%p292) target = $region16
        $region15: #{tpu_custom_call.1} parent=11 // pred_region
          %s296 = ssub.s32 2048, 2048
          %297 = vsyncadd [#allocation7], %s296
          %s298 = sshll.u32 [#allocation8], 4
          %s299 = int_to_ptr.vmem [resolvable:$true] %s298
          %304 = dma.hbm_to_vmem [thread:$0]  %s5, 2048, %s299, [#allocation7], 128, 128, 8
        $region16: #{tpu_custom_call.1} parent=11 // pred_fallthru
          _
        // Predicated region
        $region17: #{tpu_custom_call.1} parent=11 // pred_check
          %p305 = pneg %p209
        $region18: #{tpu_custom_call.1} parent=11 // pred_check_branch
          %307 = sbr.rel (%p305) target = $region20
        $region19: #{tpu_custom_call.1} parent=11 // pred_region
          %s309 = ssub.s32 1024, 1024
          %310 = vsyncadd [#allocation10], %s309
          %s311 = sshll.u32 [#allocation9], 4
          %s312 = int_to_ptr.vmem [resolvable:$true] %s311
          %317 = dma.hbm_to_vmem [thread:$0]  %s6, 1024, %s312, [#allocation10], 64, 64, 4
        $region20: #{tpu_custom_call.1} parent=11 // pred_fallthru
          _
        // Predicated region
        $region21: #{tpu_custom_call.1} parent=11 // pred_check
          %p318 = pneg %p230
        $region22: #{tpu_custom_call.1} parent=11 // pred_check_branch
          %320 = sbr.rel (%p318) target = $region24
        $region23: #{tpu_custom_call.1} parent=11 // pred_region
          %s322 = ssub.s32 1024, 1024
          %323 = vsyncadd [#allocation10], %s322
          %s324 = sshll.u32 [#allocation11], 4
          %s325 = int_to_ptr.vmem [resolvable:$true] %s324
          %330 = dma.hbm_to_vmem [thread:$0]  %s7, 1024, %s325, [#allocation10], 64, 64, 4
        $region24: #{tpu_custom_call.1} parent=11 // pred_fallthru
          _
        // Predicated region
        $region25: #{tpu_custom_call.1} parent=11 // pred_check
          %p331 = pneg %p251
        $region26: #{tpu_custom_call.1} parent=11 // pred_check_branch
          %333 = sbr.rel (%p331) target = $region28
        $region27: #{tpu_custom_call.1} parent=11 // pred_region
          _
        $region28: #{tpu_custom_call.1} parent=11 // pred_fallthru
          _
      $region12: #{tpu_custom_call.1} parent=5 // pred_fallthru
        _
      %p334 = scmp.lt.s32.totalorder %s25, 4
      // Predicated region
      $region29: #{tpu_custom_call.1} parent=5 // pred_check
        %p335 = pneg %p334
      $region30: #{tpu_custom_call.1} parent=5 // pred_check_branch
        %337 = sbr.rel (%p335) target = $region32
      $region31: #{tpu_custom_call.1} parent=5 // pred_region
        // Predicated region
        $region33: #{tpu_custom_call.1} parent=31 // pred_check
          %p338 = pneg %p57
        $region34: #{tpu_custom_call.1} parent=31 // pred_check_branch
          %340 = sbr.rel (%p338) target = $region36
        $region35: #{tpu_custom_call.1} parent=31 // pred_region
          %s341 = smul.u32 4, %s33
          %p342 = scmp.lt.s32.totalorder %s341, 7
          %s343 = scalar_select %p342, %s341, 7
          %s344 = scalar_lea.vmem %s0, %s343
          %s345 = smul.u32 4, %s33
        $region36: #{tpu_custom_call.1} parent=31 // pred_fallthru
          _
        // Predicated region
        $region37: #{tpu_custom_call.1} parent=31 // pred_check
          %p346 = pneg %p83
        $region38: #{tpu_custom_call.1} parent=31 // pred_check_branch
          %348 = sbr.rel (%p346) target = $region40
        $region39: #{tpu_custom_call.1} parent=31 // pred_region
          %s349 = sand.u32 %s73, 1
          %s350 = scalar_lea.sflag [#allocation4], %s349
          %s351 = sand.u32 %s73, 1
          %s352 = smul.addr %s351, 256
          %s353 = scalar_lea.vmem [#allocation3], %s352
          %s354 = smul.u32 64, %s33
          %s356 = ssub.s32 4096, 4096
          %357 = vsyncadd %s350, %s356
          %s358 = smul.addr %s354, 64
          %s359 = scalar_lea.hbm %s1, %s358
          %s360 = sshll.u32 %s353, 4
          %s361 = int_to_ptr.vmem [resolvable:$true] %s360
          %366 = dma.hbm_to_vmem [thread:$0]  %s359, 4096, %s361, %s350, 64, 64, 4
        $region40: #{tpu_custom_call.1} parent=31 // pred_fallthru
          _
        // Predicated region
        $region41: #{tpu_custom_call.1} parent=31 // pred_check
          %p367 = pneg %p109
        $region42: #{tpu_custom_call.1} parent=31 // pred_check_branch
          %369 = sbr.rel (%p367) target = $region44
        $region43: #{tpu_custom_call.1} parent=31 // pred_region
          %s370 = smul.u32 16, %s32
          %p371 = scmp.lt.s32.totalorder %s370, 31
          %s372 = scalar_select %p371, %s370, 31
          %s373 = smul.addr %s372, 8
          %s374 = scalar_lea.vmem %s2, %s373
          %s375 = smul.u32 16, %s32
        $region44: #{tpu_custom_call.1} parent=31 // pred_fallthru
          _
        // Predicated region
        $region45: #{tpu_custom_call.1} parent=31 // pred_check
          %p376 = pneg %p135
        $region46: #{tpu_custom_call.1} parent=31 // pred_check_branch
          %378 = sbr.rel (%p376) target = $region48
        $region47: #{tpu_custom_call.1} parent=31 // pred_region
          %s379 = sand.u32 %s25, 1
          %s380 = scalar_lea.sflag [#allocation7], %s379
          %s381 = sand.u32 %s125, 1
          %s382 = smul.addr %s381, 64
          %s383 = scalar_lea.vmem [#allocation6], %s382
          %s384 = smul.u32 16, %s32
          %s386 = ssub.s32 1024, 1024
          %387 = vsyncadd %s380, %s386
          %s388 = smul.addr %s384, 64
          %s389 = scalar_lea.hbm %s3, %s388
          %s390 = sshll.u32 %s383, 4
          %s391 = int_to_ptr.vmem [resolvable:$true] %s390
          %396 = dma.hbm_to_vmem [thread:$0]  %s389, 1024, %s391, %s380, 64, 64, 4
        $region48: #{tpu_custom_call.1} parent=31 // pred_fallthru
          _
        // Predicated region
        $region49: #{tpu_custom_call.1} parent=31 // pred_check
          %p397 = pneg %p161
        $region50: #{tpu_custom_call.1} parent=31 // pred_check_branch
          %399 = sbr.rel (%p397) target = $region52
        $region51: #{tpu_custom_call.1} parent=31 // pred_region
          %s400 = smul.u32 16, %s32
          %p401 = scmp.lt.s32.totalorder %s400, 31
          %s402 = scalar_select %p401, %s400, 31
          %s403 = smul.addr %s402, 8
          %s404 = scalar_lea.vmem %s4, %s403
          %s405 = smul.u32 16, %s32
        $region52: #{tpu_custom_call.1} parent=31 // pred_fallthru
          _
      $region32: #{tpu_custom_call.1} parent=5 // pred_fallthru
        _
      %p406 = scmp.le.s32.totalorder 1, %s25
      %p407 = scmp.lt.s32.totalorder %s25, 5
      %p408 = pnand %p406, %p407
      %p409 = pneg %p408
      // Predicated region
      $region53: #{tpu_custom_call.1} parent=5 // pred_check
        _
      $region54: #{tpu_custom_call.1} parent=5 // pred_check_branch
        %411 = sbr.rel (%p408) target = $region56
      $region55: #{tpu_custom_call.1} parent=5 // pred_region
        %s412 = ssub.s32 %s25, 1
        %s413 = sand.u32 %s76, 1
        %s414 = scalar_lea.sflag [#allocation4], %s413
        %s415 = sand.u32 %s76, 1
        %s416 = smul.addr %s415, 256
        %s417 = scalar_lea.vmem [#allocation3], %s416
        // Predicated region
        $region57: #{tpu_custom_call.1} parent=55 // pred_check
          %p418 = pneg %p89
        $region58: #{tpu_custom_call.1} parent=55 // pred_check_branch
          %420 = sbr.rel (%p418) target = $region60
        $region59: #{tpu_custom_call.1} parent=55 // pred_region
          %421 = dma.done %s414, 4096
        $region60: #{tpu_custom_call.1} parent=55 // pred_fallthru
          _
        %s422 = sand.u32 %s30, 1
        %s423 = scalar_lea.sflag [#allocation7], %s422
        %s424 = sand.u32 %s128, 1
        %s425 = smul.addr %s424, 64
        %s426 = scalar_lea.vmem [#allocation6], %s425
        // Predicated region
        $region61: #{tpu_custom_call.1} parent=55 // pred_check
          %p427 = pneg %p141
        $region62: #{tpu_custom_call.1} parent=55 // pred_check_branch
          %429 = sbr.rel (%p427) target = $region64
        $region63: #{tpu_custom_call.1} parent=55 // pred_region
          %430 = dma.done %s423, 1024
        $region64: #{tpu_custom_call.1} parent=55 // pred_fallthru
          _
        // Predicated region
        $region65: #{tpu_custom_call.1} parent=55 // pred_check
          %p431 = pneg %p188
        $region66: #{tpu_custom_call.1} parent=55 // pred_check_branch
          %433 = sbr.rel (%p431) target = $region68
        $region67: #{tpu_custom_call.1} parent=55 // pred_region
          %434 = dma.done [#allocation7], 2048
        $region68: #{tpu_custom_call.1} parent=55 // pred_fallthru
          _
        // Predicated region
        $region69: #{tpu_custom_call.1} parent=55 // pred_check
          %p435 = pneg %p209
        $region70: #{tpu_custom_call.1} parent=55 // pred_check_branch
          %437 = sbr.rel (%p435) target = $region72
        $region71: #{tpu_custom_call.1} parent=55 // pred_region
          %438 = dma.done [#allocation10], 1024
        $region72: #{tpu_custom_call.1} parent=55 // pred_fallthru
          _
        // Predicated region
        $region73: #{tpu_custom_call.1} parent=55 // pred_check
          %p439 = pneg %p230
        $region74: #{tpu_custom_call.1} parent=55 // pred_check_branch
          %441 = sbr.rel (%p439) target = $region76
        $region75: #{tpu_custom_call.1} parent=55 // pred_region
          %442 = dma.done [#allocation10], 1024
        $region76: #{tpu_custom_call.1} parent=55 // pred_fallthru
          _
        %s443 = smul.u32 4, %s35
        %p444 = scmp.lt.s32.totalorder %s443, 7
        %s445 = scalar_select %p444, %s443, 7
        %s446 = scalar_lea.vmem %s0, %s445
        %p447 = pneg %p63
        %p448 = pneg %p60
        %s449 = sand.u32 %s76, 1
        %s450 = scalar_lea.sflag [#allocation4], %s449
        %s451 = sand.u32 %s76, 1
        %s452 = smul.addr %s451, 256
        %s453 = scalar_lea.vmem [#allocation3], %s452
        %p454 = pneg %p89
        %p455 = pneg %p86
        %s456 = smul.u32 16, %s34
        %p457 = scmp.lt.s32.totalorder %s456, 31
        %s458 = scalar_select %p457, %s456, 31
        %s459 = smul.addr %s458, 8
        %s460 = scalar_lea.vmem %s2, %s459
        %p461 = pneg %p115
        %p462 = pneg %p112
        %s463 = sand.u32 %s30, 1
        %s464 = scalar_lea.sflag [#allocation7], %s463
        %s465 = sand.u32 %s128, 1
        %s466 = smul.addr %s465, 64
        %s467 = scalar_lea.vmem [#allocation6], %s466
        %p468 = pneg %p141
        %p469 = pneg %p138
        %s470 = smul.u32 16, %s34
        %p471 = scmp.lt.s32.totalorder %s470, 31
        %s472 = scalar_select %p471, %s470, 31
        %s473 = smul.addr %s472, 8
        %s474 = scalar_lea.vmem %s4, %s473
        %p475 = pneg %p167
        %p476 = pneg %p164
        %p477 = pneg %p188
        %p478 = pneg %p185
        %p479 = pneg %p209
        %p480 = pneg %p206
        %p481 = pneg %p230
        %p482 = pneg %p227
        %p483 = pneg %p251
        %p484 = pneg %p248
        %p485 = pneg %p277
        %p486 = pneg %p274
        %s487 = sand.u32 %s264, 1
        %s488 = scalar_lea.sflag [#allocation5], %s487
        %s489 = sand.u32 %s264, 1
        %s490 = smul.addr %s489, 128
        %s491 = scalar_lea.vmem [#allocation12], %s490
        %s492 = smul.u32 4, %s35
        %p493 = scmp.lt.s32.totalorder %s492, 7
        %s494 = scalar_select %p493, %s492, 7
        %s495 = scalar_lea.vmem %s0, %s494
        %s496 = smul.u32 4, %s35
        %s497 = smul.u32 64, %s35
        %s498 = smul.u32 16, %s34
        %p499 = scmp.lt.s32.totalorder %s498, 31
        %s500 = scalar_select %p499, %s498, 31
        %s501 = smul.addr %s500, 8
        %s502 = scalar_lea.vmem %s2, %s501
        %s503 = smul.u32 16, %s34
        %s504 = smul.u32 16, %s34
        %s505 = smul.u32 16, %s34
        %p506 = scmp.lt.s32.totalorder %s505, 31
        %s507 = scalar_select %p506, %s505, 31
        %s508 = smul.addr %s507, 8
        %s509 = scalar_lea.vmem %s4, %s508
        %s510 = smul.u32 16, %s34
        %s511 = smul.u32 16, %s34
        %p513 = scmp.eq.s32.totalorder %s35, 0
        // Predicated region
        $region77: #{tpu_custom_call.1} parent=55 // pred_check
          %p514 = pneg %p513
        $region78: #{tpu_custom_call.1} parent=55 // pred_check_branch
          %516 = sbr.rel (%p514) target = $region80
        $region79: #{tpu_custom_call.1} parent=55 // pred_region
          %517 = vst [vmem:[#allocation2] sm:$0xff] 0.0
          %518 = vst [vmem:[#allocation2 + $0x8] sm:$0xff] 0.0
          %519 = vst [vmem:[#allocation2 + $0x10] sm:$0xff] 0.0
          %520 = vst [vmem:[#allocation2 + $0x18] sm:$0xff] 0.0
          %521 = vst [vmem:[#allocation2 + $0x20] sm:$0xff] 0.0
          %522 = vst [vmem:[#allocation2 + $0x28] sm:$0xff] 0.0
          %523 = vst [vmem:[#allocation2 + $0x30] sm:$0xff] 0.0
          %524 = vst [vmem:[#allocation2 + $0x38] sm:$0xff] 0.0
          %525 = vst [vmem:[#allocation2 + $0x40] sm:$0xff] 0.0
          %526 = vst [vmem:[#allocation2 + $0x48] sm:$0xff] 0.0
          %527 = vst [vmem:[#allocation2 + $0x50] sm:$0xff] 0.0
          %528 = vst [vmem:[#allocation2 + $0x58] sm:$0xff] 0.0
          %529 = vst [vmem:[#allocation2 + $0x60] sm:$0xff] 0.0
          %530 = vst [vmem:[#allocation2 + $0x68] sm:$0xff] 0.0
          %531 = vst [vmem:[#allocation2 + $0x70] sm:$0xff] 0.0
          %532 = vst [vmem:[#allocation2 + $0x78] sm:$0xff] 0.0
        $region80: #{tpu_custom_call.1} parent=55 // pred_fallthru
          _
        %s533 = smul.u32 %s34, 128
        %v534 = vlaneseq
        %v535 = vshrl.u32 %v534, 7
        %v536 = vadd.s32 %v535, 8
        %v537 = vadd.s32 %v535, 16
        %v538 = vadd.s32 %v535, 24
        %v539 = vadd.s32 %v535, 32
        %v540 = vadd.s32 %v535, 40
        %v541 = vadd.s32 %v535, 48
        %v542 = vadd.s32 %v535, 56
        %v543 = vadd.s32 %v535, 64
        %v544 = vadd.s32 %v535, 72
        %v545 = vadd.s32 %v535, 80
        %v546 = vadd.s32 %v535, 88
        %v547 = vadd.s32 %v535, 96
        %v548 = vadd.s32 %v535, 104
        %v549 = vadd.s32 %v535, 112
        %v550 = vadd.s32 %v535, 120
        %v551 = vstv %s533
        %v552 = vadd.s32 %v551, %v535
        %v553 = vadd.s32 %v551, %v536
        %v554 = vadd.s32 %v551, %v537
        %v555 = vadd.s32 %v551, %v538
        %v556 = vadd.s32 %v551, %v539
        %v557 = vadd.s32 %v551, %v540
        %v558 = vadd.s32 %v551, %v541
        %v559 = vadd.s32 %v551, %v542
        %v560 = vadd.s32 %v551, %v543
        %v561 = vadd.s32 %v551, %v544
        %v562 = vadd.s32 %v551, %v545
        %v563 = vadd.s32 %v551, %v546
        %v564 = vadd.s32 %v551, %v547
        %v565 = vadd.s32 %v551, %v548
        %v566 = vadd.s32 %v551, %v549
        %v567 = vadd.s32 %v551, %v550
        %v568 = vld [vmem:[%s495] sm:$0xf]
        %v569 = vlaneseq
        %v570 = vshrl.u32 %v569, 7
        %v571 = vsub.s32 0, %v570
        %v572 = vrot.slane %v568, %v571
        %v573 = vlaneseq
        %v574 = vshrl.u32 %v573, 7
        %v575 = vsub.s32 1, %v574
        %v576 = vrot.slane %v568, %v575
        %v577 = vlaneseq
        %v578 = vshrl.u32 %v577, 7
        %v579 = vsub.s32 2, %v578
        %v580 = vrot.slane %v568, %v579
        %v581 = vlaneseq
        %v582 = vshrl.u32 %v581, 7
        %v583 = vsub.s32 3, %v582
        %v584 = vrot.slane %v568, %v583
        %vm585 = vcmp.eq.s32.totalorder %v552, %v572
        %vm586 = vcmp.eq.s32.totalorder %v552, %v576
        %vm587 = vcmp.eq.s32.totalorder %v552, %v580
        %vm588 = vcmp.eq.s32.totalorder %v552, %v584
        %vm589 = vcmp.eq.s32.totalorder %v553, %v572
        %vm590 = vcmp.eq.s32.totalorder %v553, %v576
        %vm591 = vcmp.eq.s32.totalorder %v553, %v580
        %vm592 = vcmp.eq.s32.totalorder %v553, %v584
        %vm593 = vcmp.eq.s32.totalorder %v554, %v572
        %vm594 = vcmp.eq.s32.totalorder %v554, %v576
        %vm595 = vcmp.eq.s32.totalorder %v554, %v580
        %vm596 = vcmp.eq.s32.totalorder %v554, %v584
        %vm597 = vcmp.eq.s32.totalorder %v555, %v572
        %vm598 = vcmp.eq.s32.totalorder %v555, %v576
        %vm599 = vcmp.eq.s32.totalorder %v555, %v580
        %vm600 = vcmp.eq.s32.totalorder %v555, %v584
        %vm601 = vcmp.eq.s32.totalorder %v556, %v572
        %vm602 = vcmp.eq.s32.totalorder %v556, %v576
        %vm603 = vcmp.eq.s32.totalorder %v556, %v580
        %vm604 = vcmp.eq.s32.totalorder %v556, %v584
        %vm605 = vcmp.eq.s32.totalorder %v557, %v572
        %vm606 = vcmp.eq.s32.totalorder %v557, %v576
        %vm607 = vcmp.eq.s32.totalorder %v557, %v580
        %vm608 = vcmp.eq.s32.totalorder %v557, %v584
        %vm609 = vcmp.eq.s32.totalorder %v558, %v572
        %vm610 = vcmp.eq.s32.totalorder %v558, %v576
        %vm611 = vcmp.eq.s32.totalorder %v558, %v580
        %vm612 = vcmp.eq.s32.totalorder %v558, %v584
        %vm613 = vcmp.eq.s32.totalorder %v559, %v572
        %vm614 = vcmp.eq.s32.totalorder %v559, %v576
        %vm615 = vcmp.eq.s32.totalorder %v559, %v580
        %vm616 = vcmp.eq.s32.totalorder %v559, %v584
        %vm617 = vcmp.eq.s32.totalorder %v560, %v572
        %vm618 = vcmp.eq.s32.totalorder %v560, %v576
        %vm619 = vcmp.eq.s32.totalorder %v560, %v580
        %vm620 = vcmp.eq.s32.totalorder %v560, %v584
        %vm621 = vcmp.eq.s32.totalorder %v561, %v572
        %vm622 = vcmp.eq.s32.totalorder %v561, %v576
        %vm623 = vcmp.eq.s32.totalorder %v561, %v580
        %vm624 = vcmp.eq.s32.totalorder %v561, %v584
        %vm625 = vcmp.eq.s32.totalorder %v562, %v572
        %vm626 = vcmp.eq.s32.totalorder %v562, %v576
        %vm627 = vcmp.eq.s32.totalorder %v562, %v580
        %vm628 = vcmp.eq.s32.totalorder %v562, %v584
        %vm629 = vcmp.eq.s32.totalorder %v563, %v572
        %vm630 = vcmp.eq.s32.totalorder %v563, %v576
        %vm631 = vcmp.eq.s32.totalorder %v563, %v580
        %vm632 = vcmp.eq.s32.totalorder %v563, %v584
        %vm633 = vcmp.eq.s32.totalorder %v564, %v572
        %vm634 = vcmp.eq.s32.totalorder %v564, %v576
        %vm635 = vcmp.eq.s32.totalorder %v564, %v580
        %vm636 = vcmp.eq.s32.totalorder %v564, %v584
        %vm637 = vcmp.eq.s32.totalorder %v565, %v572
        %vm638 = vcmp.eq.s32.totalorder %v565, %v576
        %vm639 = vcmp.eq.s32.totalorder %v565, %v580
        %vm640 = vcmp.eq.s32.totalorder %v565, %v584
        %vm641 = vcmp.eq.s32.totalorder %v566, %v572
        %vm642 = vcmp.eq.s32.totalorder %v566, %v576
        %vm643 = vcmp.eq.s32.totalorder %v566, %v580
        %vm644 = vcmp.eq.s32.totalorder %v566, %v584
        %vm645 = vcmp.eq.s32.totalorder %v567, %v572
        %vm646 = vcmp.eq.s32.totalorder %v567, %v576
        %vm647 = vcmp.eq.s32.totalorder %v567, %v580
        %vm648 = vcmp.eq.s32.totalorder %v567, %v584
        %v649 = vsel %vm585, 1, 0
        %v650 = vsel %vm586, 1, 0
        %v651 = vsel %vm587, 1, 0
        %v652 = vsel %vm588, 1, 0
        %v653 = vsel %vm589, 1, 0
        %v654 = vsel %vm590, 1, 0
        %v655 = vsel %vm591, 1, 0
        %v656 = vsel %vm592, 1, 0
        %v657 = vsel %vm593, 1, 0
        %v658 = vsel %vm594, 1, 0
        %v659 = vsel %vm595, 1, 0
        %v660 = vsel %vm596, 1, 0
        %v661 = vsel %vm597, 1, 0
        %v662 = vsel %vm598, 1, 0
        %v663 = vsel %vm599, 1, 0
        %v664 = vsel %vm600, 1, 0
        %v665 = vsel %vm601, 1, 0
        %v666 = vsel %vm602, 1, 0
        %v667 = vsel %vm603, 1, 0
        %v668 = vsel %vm604, 1, 0
        %v669 = vsel %vm605, 1, 0
        %v670 = vsel %vm606, 1, 0
        %v671 = vsel %vm607, 1, 0
        %v672 = vsel %vm608, 1, 0
        %v673 = vsel %vm609, 1, 0
        %v674 = vsel %vm610, 1, 0
        %v675 = vsel %vm611, 1, 0
        %v676 = vsel %vm612, 1, 0
        %v677 = vsel %vm613, 1, 0
        %v678 = vsel %vm614, 1, 0
        %v679 = vsel %vm615, 1, 0
        %v680 = vsel %vm616, 1, 0
        %v681 = vsel %vm617, 1, 0
        %v682 = vsel %vm618, 1, 0
        %v683 = vsel %vm619, 1, 0
        %v684 = vsel %vm620, 1, 0
        %v685 = vsel %vm621, 1, 0
        %v686 = vsel %vm622, 1, 0
        %v687 = vsel %vm623, 1, 0
        %v688 = vsel %vm624, 1, 0
        %v689 = vsel %vm625, 1, 0
        %v690 = vsel %vm626, 1, 0
        %v691 = vsel %vm627, 1, 0
        %v692 = vsel %vm628, 1, 0
        %v693 = vsel %vm629, 1, 0
        %v694 = vsel %vm630, 1, 0
        %v695 = vsel %vm631, 1, 0
        %v696 = vsel %vm632, 1, 0
        %v697 = vsel %vm633, 1, 0
        %v698 = vsel %vm634, 1, 0
        %v699 = vsel %vm635, 1, 0
        %v700 = vsel %vm636, 1, 0
        %v701 = vsel %vm637, 1, 0
        %v702 = vsel %vm638, 1, 0
        %v703 = vsel %vm639, 1, 0
        %v704 = vsel %vm640, 1, 0
        %v705 = vsel %vm641, 1, 0
        %v706 = vsel %vm642, 1, 0
        %v707 = vsel %vm643, 1, 0
        %v708 = vsel %vm644, 1, 0
        %v709 = vsel %vm645, 1, 0
        %v710 = vsel %vm646, 1, 0
        %v711 = vsel %vm647, 1, 0
        %v712 = vsel %vm648, 1, 0
        %v713 = vcvt.s32.f32 %v649
        %v714 = vcvt.s32.f32 %v650
        %v715 = vcvt.s32.f32 %v651
        %v716 = vcvt.s32.f32 %v652
        %v717 = vcvt.s32.f32 %v653
        %v718 = vcvt.s32.f32 %v654
        %v719 = vcvt.s32.f32 %v655
        %v720 = vcvt.s32.f32 %v656
        %v721 = vcvt.s32.f32 %v657
        %v722 = vcvt.s32.f32 %v658
        %v723 = vcvt.s32.f32 %v659
        %v724 = vcvt.s32.f32 %v660
        %v725 = vcvt.s32.f32 %v661
        %v726 = vcvt.s32.f32 %v662
        %v727 = vcvt.s32.f32 %v663
        %v728 = vcvt.s32.f32 %v664
        %v729 = vcvt.s32.f32 %v665
        %v730 = vcvt.s32.f32 %v666
        %v731 = vcvt.s32.f32 %v667
        %v732 = vcvt.s32.f32 %v668
        %v733 = vcvt.s32.f32 %v669
        %v734 = vcvt.s32.f32 %v670
        %v735 = vcvt.s32.f32 %v671
        %v736 = vcvt.s32.f32 %v672
        %v737 = vcvt.s32.f32 %v673
        %v738 = vcvt.s32.f32 %v674
        %v739 = vcvt.s32.f32 %v675
        %v740 = vcvt.s32.f32 %v676
        %v741 = vcvt.s32.f32 %v677
        %v742 = vcvt.s32.f32 %v678
        %v743 = vcvt.s32.f32 %v679
        %v744 = vcvt.s32.f32 %v680
        %v745 = vcvt.s32.f32 %v681
        %v746 = vcvt.s32.f32 %v682
        %v747 = vcvt.s32.f32 %v683
        %v748 = vcvt.s32.f32 %v684
        %v749 = vcvt.s32.f32 %v685
        %v750 = vcvt.s32.f32 %v686
        %v751 = vcvt.s32.f32 %v687
        %v752 = vcvt.s32.f32 %v688
        %v753 = vcvt.s32.f32 %v689
        %v754 = vcvt.s32.f32 %v690
        %v755 = vcvt.s32.f32 %v691
        %v756 = vcvt.s32.f32 %v692
        %v757 = vcvt.s32.f32 %v693
        %v758 = vcvt.s32.f32 %v694
        %v759 = vcvt.s32.f32 %v695
        %v760 = vcvt.s32.f32 %v696
        %v761 = vcvt.s32.f32 %v697
        %v762 = vcvt.s32.f32 %v698
        %v763 = vcvt.s32.f32 %v699
        %v764 = vcvt.s32.f32 %v700
        %v765 = vcvt.s32.f32 %v701
        %v766 = vcvt.s32.f32 %v702
        %v767 = vcvt.s32.f32 %v703
        %v768 = vcvt.s32.f32 %v704
        %v769 = vcvt.s32.f32 %v705
        %v770 = vcvt.s32.f32 %v706
        %v771 = vcvt.s32.f32 %v707
        %v772 = vcvt.s32.f32 %v708
        %v773 = vcvt.s32.f32 %v709
        %v774 = vcvt.s32.f32 %v710
        %v775 = vcvt.s32.f32 %v711
        %v776 = vcvt.s32.f32 %v712
        %v777 = vpack.c.bf16 %v717, %v713
        %v778 = vpack.c.bf16 %v718, %v714
        %v779 = vpack.c.bf16 %v719, %v715
        %v780 = vpack.c.bf16 %v720, %v716
        %v781 = vpack.c.bf16 %v725, %v721
        %v782 = vpack.c.bf16 %v726, %v722
        %v783 = vpack.c.bf16 %v727, %v723
        %v784 = vpack.c.bf16 %v728, %v724
        %v785 = vpack.c.bf16 %v733, %v729
        %v786 = vpack.c.bf16 %v734, %v730
        %v787 = vpack.c.bf16 %v735, %v731
        %v788 = vpack.c.bf16 %v736, %v732
        %v789 = vpack.c.bf16 %v741, %v737
        %v790 = vpack.c.bf16 %v742, %v738
        %v791 = vpack.c.bf16 %v743, %v739
        %v792 = vpack.c.bf16 %v744, %v740
        %v793 = vpack.c.bf16 %v749, %v745
        %v794 = vpack.c.bf16 %v750, %v746
        %v795 = vpack.c.bf16 %v751, %v747
        %v796 = vpack.c.bf16 %v752, %v748
        %v797 = vpack.c.bf16 %v757, %v753
        %v798 = vpack.c.bf16 %v758, %v754
        %v799 = vpack.c.bf16 %v759, %v755
        %v800 = vpack.c.bf16 %v760, %v756
        %v801 = vpack.c.bf16 %v765, %v761
        %v802 = vpack.c.bf16 %v766, %v762
        %v803 = vpack.c.bf16 %v767, %v763
        %v804 = vpack.c.bf16 %v768, %v764
        %v805 = vpack.c.bf16 %v773, %v769
        %v806 = vpack.c.bf16 %v774, %v770
        %v807 = vpack.c.bf16 %v775, %v771
        %v808 = vpack.c.bf16 %v776, %v772
        %v809 = vld [vmem:[#allocation2] sm:$0xff]
        %v810 = vld [vmem:[#allocation2 + $0x8] sm:$0xff]
        %v811 = vld [vmem:[#allocation2 + $0x10] sm:$0xff]
        %v812 = vld [vmem:[#allocation2 + $0x18] sm:$0xff]
        %v813 = vld [vmem:[#allocation2 + $0x20] sm:$0xff]
        %v814 = vld [vmem:[#allocation2 + $0x28] sm:$0xff]
        %v815 = vld [vmem:[#allocation2 + $0x30] sm:$0xff]
        %v816 = vld [vmem:[#allocation2 + $0x38] sm:$0xff]
        %v817 = vld [vmem:[#allocation2 + $0x40] sm:$0xff]
        %v818 = vld [vmem:[#allocation2 + $0x48] sm:$0xff]
        %v819 = vld [vmem:[#allocation2 + $0x50] sm:$0xff]
        %v820 = vld [vmem:[#allocation2 + $0x58] sm:$0xff]
        %v821 = vld [vmem:[#allocation2 + $0x60] sm:$0xff]
        %v822 = vld [vmem:[#allocation2 + $0x68] sm:$0xff]
        %v823 = vld [vmem:[#allocation2 + $0x70] sm:$0xff]
        %v824 = vld [vmem:[#allocation2 + $0x78] sm:$0xff]
        %v825 = vld [vmem:[%s417] sm:$0xf]
        %v826 = vld [vmem:[%s417 + $0x4] sm:$0xf]
        %v827 = vld [vmem:[%s417 + $0x8] sm:$0xf]
        %v828 = vld [vmem:[%s417 + $0xc] sm:$0xf]
        %v829 = vld [vmem:[%s417 + $0x10] sm:$0xf]
        %v830 = vld [vmem:[%s417 + $0x14] sm:$0xf]
        %v831 = vld [vmem:[%s417 + $0x18] sm:$0xf]
        %v832 = vld [vmem:[%s417 + $0x1c] sm:$0xf]
        %v833 = vld [vmem:[%s417 + $0x20] sm:$0xf]
        %v834 = vld [vmem:[%s417 + $0x24] sm:$0xf]
        %v835 = vld [vmem:[%s417 + $0x28] sm:$0xf]
        %v836 = vld [vmem:[%s417 + $0x2c] sm:$0xf]
        %v837 = vld [vmem:[%s417 + $0x30] sm:$0xf]
        %v838 = vld [vmem:[%s417 + $0x34] sm:$0xf]
        %v839 = vld [vmem:[%s417 + $0x38] sm:$0xf]
        %v840 = vld [vmem:[%s417 + $0x3c] sm:$0xf]
        %v841 = vld [vmem:[%s417 + $0x40] sm:$0xf]
        %v842 = vld [vmem:[%s417 + $0x44] sm:$0xf]
        %v843 = vld [vmem:[%s417 + $0x48] sm:$0xf]
        %v844 = vld [vmem:[%s417 + $0x4c] sm:$0xf]
        %v845 = vld [vmem:[%s417 + $0x50] sm:$0xf]
        %v846 = vld [vmem:[%s417 + $0x54] sm:$0xf]
        %v847 = vld [vmem:[%s417 + $0x58] sm:$0xf]
        %v848 = vld [vmem:[%s417 + $0x5c] sm:$0xf]
        %v849 = vld [vmem:[%s417 + $0x60] sm:$0xf]
        %v850 = vld [vmem:[%s417 + $0x64] sm:$0xf]
        %v851 = vld [vmem:[%s417 + $0x68] sm:$0xf]
        %v852 = vld [vmem:[%s417 + $0x6c] sm:$0xf]
        %v853 = vld [vmem:[%s417 + $0x70] sm:$0xf]
        %v854 = vld [vmem:[%s417 + $0x74] sm:$0xf]
        %v855 = vld [vmem:[%s417 + $0x78] sm:$0xf]
        %v856 = vld [vmem:[%s417 + $0x7c] sm:$0xf]
        %v857 = vld [vmem:[%s417 + $0x80] sm:$0xf]
        %v858 = vld [vmem:[%s417 + $0x84] sm:$0xf]
        %v859 = vld [vmem:[%s417 + $0x88] sm:$0xf]
        %v860 = vld [vmem:[%s417 + $0x8c] sm:$0xf]
        %v861 = vld [vmem:[%s417 + $0x90] sm:$0xf]
        %v862 = vld [vmem:[%s417 + $0x94] sm:$0xf]
        %v863 = vld [vmem:[%s417 + $0x98] sm:$0xf]
        %v864 = vld [vmem:[%s417 + $0x9c] sm:$0xf]
        %v865 = vld [vmem:[%s417 + $0xa0] sm:$0xf]
        %v866 = vld [vmem:[%s417 + $0xa4] sm:$0xf]
        %v867 = vld [vmem:[%s417 + $0xa8] sm:$0xf]
        %v868 = vld [vmem:[%s417 + $0xac] sm:$0xf]
        %v869 = vld [vmem:[%s417 + $0xb0] sm:$0xf]
        %v870 = vld [vmem:[%s417 + $0xb4] sm:$0xf]
        %v871 = vld [vmem:[%s417 + $0xb8] sm:$0xf]
        %v872 = vld [vmem:[%s417 + $0xbc] sm:$0xf]
        %v873 = vld [vmem:[%s417 + $0xc0] sm:$0xf]
        %v874 = vld [vmem:[%s417 + $0xc4] sm:$0xf]
        %v875 = vld [vmem:[%s417 + $0xc8] sm:$0xf]
        %v876 = vld [vmem:[%s417 + $0xcc] sm:$0xf]
        %v877 = vld [vmem:[%s417 + $0xd0] sm:$0xf]
        %v878 = vld [vmem:[%s417 + $0xd4] sm:$0xf]
        %v879 = vld [vmem:[%s417 + $0xd8] sm:$0xf]
        %v880 = vld [vmem:[%s417 + $0xdc] sm:$0xf]
        %v881 = vld [vmem:[%s417 + $0xe0] sm:$0xf]
        %v882 = vld [vmem:[%s417 + $0xe4] sm:$0xf]
        %v883 = vld [vmem:[%s417 + $0xe8] sm:$0xf]
        %v884 = vld [vmem:[%s417 + $0xec] sm:$0xf]
        %v885 = vld [vmem:[%s417 + $0xf0] sm:$0xf]
        %v886 = vld [vmem:[%s417 + $0xf4] sm:$0xf]
        %v887 = vld [vmem:[%s417 + $0xf8] sm:$0xf]
        %v888 = vld [vmem:[%s417 + $0xfc] sm:$0xf]
        %v953 = vunpack.c.l.b16 %v825
        %v954 = vunpack.c.l.b16 %v826
        %v955 = vunpack.c.l.b16 %v827
        %v956 = vunpack.c.l.b16 %v828
        %v957 = vunpack.c.l.b16 %v829
        %v958 = vunpack.c.l.b16 %v830
        %v959 = vunpack.c.l.b16 %v831
        %v960 = vunpack.c.l.b16 %v832
        %v961 = vunpack.c.l.b16 %v833
        %v962 = vunpack.c.l.b16 %v834
        %v963 = vunpack.c.l.b16 %v835
        %v964 = vunpack.c.l.b16 %v836
        %v965 = vunpack.c.l.b16 %v837
        %v966 = vunpack.c.l.b16 %v838
        %v967 = vunpack.c.l.b16 %v839
        %v968 = vunpack.c.l.b16 %v840
        %v969 = vunpack.c.l.b16 %v841
        %v970 = vunpack.c.l.b16 %v842
        %v971 = vunpack.c.l.b16 %v843
        %v972 = vunpack.c.l.b16 %v844
        %v973 = vunpack.c.l.b16 %v845
        %v974 = vunpack.c.l.b16 %v846
        %v975 = vunpack.c.l.b16 %v847
        %v976 = vunpack.c.l.b16 %v848
        %v977 = vunpack.c.l.b16 %v849
        %v978 = vunpack.c.l.b16 %v850
        %v979 = vunpack.c.l.b16 %v851
        %v980 = vunpack.c.l.b16 %v852
        %v981 = vunpack.c.l.b16 %v853
        %v982 = vunpack.c.l.b16 %v854
        %v983 = vunpack.c.l.b16 %v855
        %v984 = vunpack.c.l.b16 %v856
        %v985 = vunpack.c.l.b16 %v857
        %v986 = vunpack.c.l.b16 %v858
        %v987 = vunpack.c.l.b16 %v859
        %v988 = vunpack.c.l.b16 %v860
        %v989 = vunpack.c.l.b16 %v861
        %v990 = vunpack.c.l.b16 %v862
        %v991 = vunpack.c.l.b16 %v863
        %v992 = vunpack.c.l.b16 %v864
        %v993 = vunpack.c.l.b16 %v865
        %v994 = vunpack.c.l.b16 %v866
        %v995 = vunpack.c.l.b16 %v867
        %v996 = vunpack.c.l.b16 %v868
        %v997 = vunpack.c.l.b16 %v869
        %v998 = vunpack.c.l.b16 %v870
        %v999 = vunpack.c.l.b16 %v871
        %v1000 = vunpack.c.l.b16 %v872
        %v1001 = vunpack.c.l.b16 %v873
        %v1002 = vunpack.c.l.b16 %v874
        %v1003 = vunpack.c.l.b16 %v875
        %v1004 = vunpack.c.l.b16 %v876
        %v1005 = vunpack.c.l.b16 %v877
        %v1006 = vunpack.c.l.b16 %v878
        %v1007 = vunpack.c.l.b16 %v879
        %v1008 = vunpack.c.l.b16 %v880
        %v1009 = vunpack.c.l.b16 %v881
        %v1010 = vunpack.c.l.b16 %v882
        %v1011 = vunpack.c.l.b16 %v883
        %v1012 = vunpack.c.l.b16 %v884
        %v1013 = vunpack.c.l.b16 %v885
        %v1014 = vunpack.c.l.b16 %v886
        %v1015 = vunpack.c.l.b16 %v887
        %v1016 = vunpack.c.l.b16 %v888
        %v1017 = vpack.c.b16 %v954, %v953
        %v1018 = vpack.c.b16 %v956, %v955
        %v1019 = vpack.c.b16 %v958, %v957
        %v1020 = vpack.c.b16 %v960, %v959
        %v1021 = vpack.c.b16 %v962, %v961
        %v1022 = vpack.c.b16 %v964, %v963
        %v1023 = vpack.c.b16 %v966, %v965
        %v1024 = vpack.c.b16 %v968, %v967
        %v1025 = vpack.c.b16 %v970, %v969
        %v1026 = vpack.c.b16 %v972, %v971
        %v1027 = vpack.c.b16 %v974, %v973
        %v1028 = vpack.c.b16 %v976, %v975
        %v1029 = vpack.c.b16 %v978, %v977
        %v1030 = vpack.c.b16 %v980, %v979
        %v1031 = vpack.c.b16 %v982, %v981
        %v1032 = vpack.c.b16 %v984, %v983
        %v1033 = vpack.c.b16 %v986, %v985
        %v1034 = vpack.c.b16 %v988, %v987
        %v1035 = vpack.c.b16 %v990, %v989
        %v1036 = vpack.c.b16 %v992, %v991
        %v1037 = vpack.c.b16 %v994, %v993
        %v1038 = vpack.c.b16 %v996, %v995
        %v1039 = vpack.c.b16 %v998, %v997
        %v1040 = vpack.c.b16 %v1000, %v999
        %v1041 = vpack.c.b16 %v1002, %v1001
        %v1042 = vpack.c.b16 %v1004, %v1003
        %v1043 = vpack.c.b16 %v1006, %v1005
        %v1044 = vpack.c.b16 %v1008, %v1007
        %v1045 = vpack.c.b16 %v1010, %v1009
        %v1046 = vpack.c.b16 %v1012, %v1011
        %v1047 = vpack.c.b16 %v1014, %v1013
        %v1048 = vpack.c.b16 %v1016, %v1015
        %1081 = vmatprep.subr.bf16.mxu0 0
        %1082 = vmatpush1.bf16.msra.mxu0 %v1017
        %1083 = vmatprep.subr.bf16.mxu0 0
        %1084 = vmatpush1.bf16.msra.mxu0 %v1018
        %1085 = vmatprep.subr.bf16.mxu0 0
        %1086 = vmatpush1.bf16.msra.mxu0 %v1019
        %1087 = vmatprep.subr.bf16.mxu0 0
        %1088 = vmatpush1.bf16.msra.mxu0 %v1020
        %1089 = vmatprep.subr.bf16.mxu0 0
        %1090 = vmatpush1.bf16.msra.mxu0 %v1021
        %1091 = vmatprep.subr.bf16.mxu0 0
        %1092 = vmatpush1.bf16.msra.mxu0 %v1022
        %1093 = vmatprep.subr.bf16.mxu0 0
        %1094 = vmatpush1.bf16.msra.mxu0 %v1023
        %1095 = vmatprep.subr.bf16.mxu0 0
        %1096 = vmatpush1.bf16.msra.mxu0 %v1024
        %1097 = vmatprep.subr.bf16.mxu0 0
        %1098 = vmatpush1.bf16.msra.mxu0 %v1025
        %1099 = vmatprep.subr.bf16.mxu0 0
        %1100 = vmatpush1.bf16.msra.mxu0 %v1026
        %1101 = vmatprep.subr.bf16.mxu0 0
        %1102 = vmatpush1.bf16.msra.mxu0 %v1027
        %1103 = vmatprep.subr.bf16.mxu0 0
        %1104 = vmatpush1.bf16.msra.mxu0 %v1028
        %1105 = vmatprep.subr.bf16.mxu0 0
        %1106 = vmatpush1.bf16.msra.mxu0 %v1029
        %1107 = vmatprep.subr.bf16.mxu0 0
        %1108 = vmatpush1.bf16.msra.mxu0 %v1030
        %1109 = vmatprep.subr.bf16.mxu0 0
        %1110 = vmatpush1.bf16.msra.mxu0 %v1031
        %1111 = vmatprep.subr.bf16.mxu0 0
        %1112 = vmatpush1.bf16.msra.mxu0 %v1032
        %1113 = vmatprep.mubr.bf16.mxu0 %v778
        %1114 = vmatmul.mubr.bf16.gmra.mrb[0].mxu0 %v777
        %v1115 = vpop.f32.mrb[0].mxu0
        %v1116 = vadd.f32 0.0, %v1115
        %v1117 = vpop.f32.mrb[0].mxu0
        %v1118 = vpop.f32.mrb[0].mxu0
        %v1119 = vadd.f32 0.0, %v1118
        %v1120 = vpop.f32.mrb[0].mxu0
        %1121 = vmatprep.mubr.bf16.mxu0 %v782
        %1122 = vmatmul.mubr.bf16.gmra.mrb[0].mxu0 %v781
        %v1123 = vpop.f32.mrb[0].mxu0
        %v1124 = vadd.f32 0.0, %v1123
        %v1125 = vpop.f32.mrb[0].mxu0
        %v1126 = vpop.f32.mrb[0].mxu0
        %v1127 = vadd.f32 0.0, %v1126
        %v1128 = vpop.f32.mrb[0].mxu0
        %1129 = vmatprep.mubr.bf16.mxu0 %v786
        %1130 = vmatmul.mubr.bf16.gmra.mrb[0].mxu0 %v785
        %v1131 = vpop.f32.mrb[0].mxu0
        %v1132 = vadd.f32 0.0, %v1131
        %v1133 = vpop.f32.mrb[0].mxu0
        %v1134 = vpop.f32.mrb[0].mxu0
        %v1135 = vadd.f32 0.0, %v1134
        %v1136 = vpop.f32.mrb[0].mxu0
        %1137 = vmatprep.mubr.bf16.mxu0 %v790
        %1138 = vmatmul.mubr.bf16.gmra.mrb[0].mxu0 %v789
        %v1139 = vpop.f32.mrb[0].mxu0
        %v1140 = vadd.f32 0.0, %v1139
        %v1141 = vpop.f32.mrb[0].mxu0
        %v1142 = vpop.f32.mrb[0].mxu0
        %v1143 = vadd.f32 0.0, %v1142
        %v1144 = vpop.f32.mrb[0].mxu0
        %1145 = vmatprep.mubr.bf16.mxu0 %v794
        %1146 = vmatmul.mubr.bf16.gmra.mrb[0].mxu0 %v793
        %v1147 = vpop.f32.mrb[0].mxu0
        %v1148 = vadd.f32 0.0, %v1147
        %v1149 = vpop.f32.mrb[0].mxu0
        %v1150 = vpop.f32.mrb[0].mxu0
        %v1151 = vadd.f32 0.0, %v1150
        %v1152 = vpop.f32.mrb[0].mxu0
        %1153 = vmatprep.mubr.bf16.mxu0 %v798
        %1154 = vmatmul.mubr.bf16.gmra.mrb[0].mxu0 %v797
        %v1155 = vpop.f32.mrb[0].mxu0
        %v1156 = vadd.f32 0.0, %v1155
        %v1157 = vpop.f32.mrb[0].mxu0
        %v1158 = vpop.f32.mrb[0].mxu0
        %v1159 = vadd.f32 0.0, %v1158
        %v1160 = vpop.f32.mrb[0].mxu0
        %1161 = vmatprep.mubr.bf16.mxu0 %v802
        %1162 = vmatmul.mubr.bf16.gmra.mrb[0].mxu0 %v801
        %v1163 = vpop.f32.mrb[0].mxu0
        %v1164 = vadd.f32 0.0, %v1163
        %v1165 = vpop.f32.mrb[0].mxu0
        %v1166 = vpop.f32.mrb[0].mxu0
        %v1167 = vadd.f32 0.0, %v1166
        %v1168 = vpop.f32.mrb[0].mxu0
        %1169 = vmatprep.mubr.bf16.mxu0 %v806
        %1170 = vmatmul.mubr.bf16.gmra.mrb[0].mxu0 %v805
        %v1171 = vpop.f32.mrb[0].mxu0
        %v1172 = vadd.f32 0.0, %v1171
        %v1173 = vpop.f32.mrb[0].mxu0
        %v1174 = vpop.f32.mrb[0].mxu0
        %v1175 = vadd.f32 0.0, %v1174
        %v1176 = vpop.f32.mrb[0].mxu0
        %1177 = vdwg.mxu0
        %1178 = vmatprep.subr.bf16.mxu0 0
        %1179 = vmatpush1.bf16.msra.mxu0 %v1033
        %1180 = vmatprep.subr.bf16.mxu0 0
        %1181 = vmatpush1.bf16.msra.mxu0 %v1034
        %1182 = vmatprep.subr.bf16.mxu0 0
        %1183 = vmatpush1.bf16.msra.mxu0 %v1035
        %1184 = vmatprep.subr.bf16.mxu0 0
        %1185 = vmatpush1.bf16.msra.mxu0 %v1036
        %1186 = vmatprep.subr.bf16.mxu0 0
        %1187 = vmatpush1.bf16.msra.mxu0 %v1037
        %1188 = vmatprep.subr.bf16.mxu0 0
        %1189 = vmatpush1.bf16.msra.mxu0 %v1038
        %1190 = vmatprep.subr.bf16.mxu0 0
        %1191 = vmatpush1.bf16.msra.mxu0 %v1039
        %1192 = vmatprep.subr.bf16.mxu0 0
        %1193 = vmatpush1.bf16.msra.mxu0 %v1040
        %1194 = vmatprep.subr.bf16.mxu0 0
        %1195 = vmatpush1.bf16.msra.mxu0 %v1041
        %1196 = vmatprep.subr.bf16.mxu0 0
        %1197 = vmatpush1.bf16.msra.mxu0 %v1042
        %1198 = vmatprep.subr.bf16.mxu0 0
        %1199 = vmatpush1.bf16.msra.mxu0 %v1043
        %1200 = vmatprep.subr.bf16.mxu0 0
        %1201 = vmatpush1.bf16.msra.mxu0 %v1044
        %1202 = vmatprep.subr.bf16.mxu0 0
        %1203 = vmatpush1.bf16.msra.mxu0 %v1045
        %1204 = vmatprep.subr.bf16.mxu0 0
        %1205 = vmatpush1.bf16.msra.mxu0 %v1046
        %1206 = vmatprep.subr.bf16.mxu0 0
        %1207 = vmatpush1.bf16.msra.mxu0 %v1047
        %1208 = vmatprep.subr.bf16.mxu0 0
        %1209 = vmatpush1.bf16.msra.mxu0 %v1048
        %1210 = vmatprep.mubr.bf16.mxu0 %v780
        %1211 = vmatmul.mubr.bf16.gmra.mrb[0].mxu0 %v779
        %v1212 = vpop.f32.mrb[0].mxu0
        %v1213 = vadd.f32 %v1116, %v1212
        %v1214 = vpop.f32.mrb[0].mxu0
        %v1215 = vpop.f32.mrb[0].mxu0
        %v1216 = vadd.f32 %v1119, %v1215
        %v1217 = vpop.f32.mrb[0].mxu0
        %1218 = vmatprep.mubr.bf16.mxu0 %v784
        %1219 = vmatmul.mubr.bf16.gmra.mrb[0].mxu0 %v783
        %v1220 = vpop.f32.mrb[0].mxu0
        %v1221 = vadd.f32 %v1124, %v1220
        %v1222 = vpop.f32.mrb[0].mxu0
        %v1223 = vpop.f32.mrb[0].mxu0
        %v1224 = vadd.f32 %v1127, %v1223
        %v1225 = vpop.f32.mrb[0].mxu0
        %1226 = vmatprep.mubr.bf16.mxu0 %v788
        %1227 = vmatmul.mubr.bf16.gmra.mrb[0].mxu0 %v787
        %v1228 = vpop.f32.mrb[0].mxu0
        %v1229 = vadd.f32 %v1132, %v1228
        %v1230 = vpop.f32.mrb[0].mxu0
        %v1231 = vpop.f32.mrb[0].mxu0
        %v1232 = vadd.f32 %v1135, %v1231
        %v1233 = vpop.f32.mrb[0].mxu0
        %1234 = vmatprep.mubr.bf16.mxu0 %v792
        %1235 = vmatmul.mubr.bf16.gmra.mrb[0].mxu0 %v791
        %v1236 = vpop.f32.mrb[0].mxu0
        %v1237 = vadd.f32 %v1140, %v1236
        %v1238 = vpop.f32.mrb[0].mxu0
        %v1239 = vpop.f32.mrb[0].mxu0
        %v1240 = vadd.f32 %v1143, %v1239
        %v1241 = vpop.f32.mrb[0].mxu0
        %1242 = vmatprep.mubr.bf16.mxu0 %v796
        %1243 = vmatmul.mubr.bf16.gmra.mrb[0].mxu0 %v795
        %v1244 = vpop.f32.mrb[0].mxu0
        %v1245 = vadd.f32 %v1148, %v1244
        %v1246 = vpop.f32.mrb[0].mxu0
        %v1247 = vpop.f32.mrb[0].mxu0
        %v1248 = vadd.f32 %v1151, %v1247
        %v1249 = vpop.f32.mrb[0].mxu0
        %1250 = vmatprep.mubr.bf16.mxu0 %v800
        %1251 = vmatmul.mubr.bf16.gmra.mrb[0].mxu0 %v799
        %v1252 = vpop.f32.mrb[0].mxu0
        %v1253 = vadd.f32 %v1156, %v1252
        %v1254 = vpop.f32.mrb[0].mxu0
        %v1255 = vpop.f32.mrb[0].mxu0
        %v1256 = vadd.f32 %v1159, %v1255
        %v1257 = vpop.f32.mrb[0].mxu0
        %1258 = vmatprep.mubr.bf16.mxu0 %v804
        %1259 = vmatmul.mubr.bf16.gmra.mrb[0].mxu0 %v803
        %v1260 = vpop.f32.mrb[0].mxu0
        %v1261 = vadd.f32 %v1164, %v1260
        %v1262 = vpop.f32.mrb[0].mxu0
        %v1263 = vpop.f32.mrb[0].mxu0
        %v1264 = vadd.f32 %v1167, %v1263
        %v1265 = vpop.f32.mrb[0].mxu0
        %1266 = vmatprep.mubr.bf16.mxu0 %v808
        %1267 = vmatmul.mubr.bf16.gmra.mrb[0].mxu0 %v807
        %v1268 = vpop.f32.mrb[0].mxu0
        %v1269 = vadd.f32 %v1172, %v1268
        %v1270 = vpop.f32.mrb[0].mxu0
        %v1271 = vpop.f32.mrb[0].mxu0
        %v1272 = vadd.f32 %v1175, %v1271
        %v1273 = vpop.f32.mrb[0].mxu0
        %1274 = vdwg.mxu0
        %v1275 = vadd.f32 %v809, %v1213
        %v1276 = vadd.f32 %v810, %v1216
        %v1277 = vadd.f32 %v811, %v1221
        %v1278 = vadd.f32 %v812, %v1224
        %v1279 = vadd.f32 %v813, %v1229
        %v1280 = vadd.f32 %v814, %v1232
        %v1281 = vadd.f32 %v815, %v1237
        %v1282 = vadd.f32 %v816, %v1240
        %v1283 = vadd.f32 %v817, %v1245
        %v1284 = vadd.f32 %v818, %v1248
        %v1285 = vadd.f32 %v819, %v1253
        %v1286 = vadd.f32 %v820, %v1256
        %v1287 = vadd.f32 %v821, %v1261
        %v1288 = vadd.f32 %v822, %v1264
        %v1289 = vadd.f32 %v823, %v1269
        %v1290 = vadd.f32 %v824, %v1272
        %1291 = vst [vmem:[#allocation2] sm:$0xff] %v1275
        %1292 = vst [vmem:[#allocation2 + $0x8] sm:$0xff] %v1276
        %1293 = vst [vmem:[#allocation2 + $0x10] sm:$0xff] %v1277
        %1294 = vst [vmem:[#allocation2 + $0x18] sm:$0xff] %v1278
        %1295 = vst [vmem:[#allocation2 + $0x20] sm:$0xff] %v1279
        %1296 = vst [vmem:[#allocation2 + $0x28] sm:$0xff] %v1280
        %1297 = vst [vmem:[#allocation2 + $0x30] sm:$0xff] %v1281
        %1298 = vst [vmem:[#allocation2 + $0x38] sm:$0xff] %v1282
        %1299 = vst [vmem:[#allocation2 + $0x40] sm:$0xff] %v1283
        %1300 = vst [vmem:[#allocation2 + $0x48] sm:$0xff] %v1284
        %1301 = vst [vmem:[#allocation2 + $0x50] sm:$0xff] %v1285
        %1302 = vst [vmem:[#allocation2 + $0x58] sm:$0xff] %v1286
        %1303 = vst [vmem:[#allocation2 + $0x60] sm:$0xff] %v1287
        %1304 = vst [vmem:[#allocation2 + $0x68] sm:$0xff] %v1288
        %1305 = vst [vmem:[#allocation2 + $0x70] sm:$0xff] %v1289
        %1306 = vst [vmem:[#allocation2 + $0x78] sm:$0xff] %v1290
        %p1307 = scmp.eq.s32.totalorder %s35, 1
        // Predicated region
        $region81: #{tpu_custom_call.1} parent=55 // pred_check
          %p1308 = pneg %p1307
        $region82: #{tpu_custom_call.1} parent=55 // pred_check_branch
          %1310 = sbr.rel (%p1308) target = $region84
        $region83: #{tpu_custom_call.1} parent=55 // pred_region
          %v1311 = vld [vmem:[#allocation2] sm:$0xff]
          %v1312 = vld [vmem:[#allocation2 + $0x8] sm:$0xff]
          %v1313 = vld [vmem:[#allocation2 + $0x10] sm:$0xff]
          %v1314 = vld [vmem:[#allocation2 + $0x18] sm:$0xff]
          %v1315 = vld [vmem:[#allocation2 + $0x20] sm:$0xff]
          %v1316 = vld [vmem:[#allocation2 + $0x28] sm:$0xff]
          %v1317 = vld [vmem:[#allocation2 + $0x30] sm:$0xff]
          %v1318 = vld [vmem:[#allocation2 + $0x38] sm:$0xff]
          %v1319 = vld [vmem:[#allocation2 + $0x40] sm:$0xff]
          %v1320 = vld [vmem:[#allocation2 + $0x48] sm:$0xff]
          %v1321 = vld [vmem:[#allocation2 + $0x50] sm:$0xff]
          %v1322 = vld [vmem:[#allocation2 + $0x58] sm:$0xff]
          %v1323 = vld [vmem:[#allocation2 + $0x60] sm:$0xff]
          %v1324 = vld [vmem:[#allocation2 + $0x68] sm:$0xff]
          %v1325 = vld [vmem:[#allocation2 + $0x70] sm:$0xff]
          %v1326 = vld [vmem:[#allocation2 + $0x78] sm:$0xff]
          %v1327 = vld [vmem:[#allocation8] sm:$0xff]
          %v1328 = vld [vmem:[#allocation8 + $0x8] sm:$0xff]
          %v1329 = vld [vmem:[#allocation8 + $0x10] sm:$0xff]
          %v1330 = vld [vmem:[#allocation8 + $0x18] sm:$0xff]
          %v1331 = vld [vmem:[#allocation8 + $0x20] sm:$0xff]
          %v1332 = vld [vmem:[#allocation8 + $0x28] sm:$0xff]
          %v1333 = vld [vmem:[#allocation8 + $0x30] sm:$0xff]
          %v1334 = vld [vmem:[#allocation8 + $0x38] sm:$0xff]
          %v1335 = vld [vmem:[#allocation8 + $0x40] sm:$0xff]
          %v1336 = vld [vmem:[#allocation8 + $0x48] sm:$0xff]
          %v1337 = vld [vmem:[#allocation8 + $0x50] sm:$0xff]
          %v1338 = vld [vmem:[#allocation8 + $0x58] sm:$0xff]
          %v1339 = vld [vmem:[#allocation8 + $0x60] sm:$0xff]
          %v1340 = vld [vmem:[#allocation8 + $0x68] sm:$0xff]
          %v1341 = vld [vmem:[#allocation8 + $0x70] sm:$0xff]
          %v1342 = vld [vmem:[#allocation8 + $0x78] sm:$0xff]
          %1343 = vmatprep.subr.mxu0 0.0
          %1344 = vmatpush1.msra.mxu0 %v1327
          %1345 = vmatprep.subr.mxu0 0.0
          %1346 = vmatpush1.msra.mxu0 %v1328
          %1347 = vmatprep.subr.mxu0 0.0
          %1348 = vmatpush1.msra.mxu0 %v1329
          %1349 = vmatprep.subr.mxu0 0.0
          %1350 = vmatpush1.msra.mxu0 %v1330
          %1351 = vmatprep.subr.mxu0 0.0
          %1352 = vmatpush1.msra.mxu0 %v1331
          %1353 = vmatprep.subr.mxu0 0.0
          %1354 = vmatpush1.msra.mxu0 %v1332
          %1355 = vmatprep.subr.mxu0 0.0
          %1356 = vmatpush1.msra.mxu0 %v1333
          %1357 = vmatprep.subr.mxu0 0.0
          %1358 = vmatpush1.msra.mxu0 %v1334
          %1359 = vmatprep.subr.mxu0 0.0
          %1360 = vmatpush1.msra.mxu0 %v1335
          %1361 = vmatprep.subr.mxu0 0.0
          %1362 = vmatpush1.msra.mxu0 %v1336
          %1363 = vmatprep.subr.mxu0 0.0
          %1364 = vmatpush1.msra.mxu0 %v1337
          %1365 = vmatprep.subr.mxu0 0.0
          %1366 = vmatpush1.msra.mxu0 %v1338
          %1367 = vmatprep.subr.mxu0 0.0
          %1368 = vmatpush1.msra.mxu0 %v1339
          %1369 = vmatprep.subr.mxu0 0.0
          %1370 = vmatpush1.msra.mxu0 %v1340
          %1371 = vmatprep.subr.mxu0 0.0
          %1372 = vmatpush1.msra.mxu0 %v1341
          %1373 = vmatprep.subr.mxu0 0.0
          %1374 = vmatpush1.msra.mxu0 %v1342
          %1375 = vmatprep.subr.mxu0 0.0
          %1376 = vmatpush1.msra.mxu0 0.0
          %1377 = vmatprep.subr.mxu0 0.0
          %1378 = vmatpush1.msra.mxu0 0.0
          %1379 = vmatprep.subr.mxu0 0.0
          %1380 = vmatpush1.msra.mxu0 0.0
          %1381 = vmatprep.subr.mxu0 0.0
          %1382 = vmatpush1.msra.mxu0 0.0
          %1383 = vmatprep.subr.mxu0 0.0
          %1384 = vmatpush1.msra.mxu0 0.0
          %1385 = vmatprep.subr.mxu0 0.0
          %1386 = vmatpush1.msra.mxu0 0.0
          %1387 = vmatprep.subr.mxu0 0.0
          %1388 = vmatpush1.msra.mxu0 0.0
          %1389 = vmatprep.subr.mxu0 0.0
          %1390 = vmatpush1.msra.mxu0 0.0
          %1391 = vmatprep.subr.mxu0 0.0
          %1392 = vmatpush1.msra.mxu0 0.0
          %1393 = vmatprep.subr.mxu0 0.0
          %1394 = vmatpush1.msra.mxu0 0.0
          %1395 = vmatprep.subr.mxu0 0.0
          %1396 = vmatpush1.msra.mxu0 0.0
          %1397 = vmatprep.subr.mxu0 0.0
          %1398 = vmatpush1.msra.mxu0 0.0
          %1399 = vmatprep.subr.mxu0 0.0
          %1400 = vmatpush1.msra.mxu0 0.0
          %1401 = vmatprep.subr.mxu0 0.0
          %1402 = vmatpush1.msra.mxu0 0.0
          %1403 = vmatprep.subr.mxu0 0.0
          %1404 = vmatpush1.msra.mxu0 0.0
          %1405 = vmatprep.subr.mxu0 0.0
          %1406 = vmatpush1.msra.mxu0 0.0
          %1407 = vmatprep.mubr.f32.mxu0 0.0
          %1408 = vmatmul.mubr.f32.gmra.mrb[0].mxu0 %v1311
          %v1409 = vpop.f32.mrb[0].mxu0
          %v1410 = vadd.f32 0.0, %v1409
          %v1411 = vpop.f32.mrb[0].mxu0
          %1412 = vmatprep.mubr.f32.mxu0 0.0
          %1413 = vmatmul.mubr.f32.gmra.mrb[0].mxu0 %v1312
          %v1414 = vpop.f32.mrb[0].mxu0
          %v1415 = vadd.f32 0.0, %v1414
          %v1416 = vpop.f32.mrb[0].mxu0
          %1417 = vmatprep.mubr.f32.mxu0 0.0
          %1418 = vmatmul.mubr.f32.gmra.mrb[0].mxu0 %v1313
          %v1419 = vpop.f32.mrb[0].mxu0
          %v1420 = vadd.f32 0.0, %v1419
          %v1421 = vpop.f32.mrb[0].mxu0
          %1422 = vmatprep.mubr.f32.mxu0 0.0
          %1423 = vmatmul.mubr.f32.gmra.mrb[0].mxu0 %v1314
          %v1424 = vpop.f32.mrb[0].mxu0
          %v1425 = vadd.f32 0.0, %v1424
          %v1426 = vpop.f32.mrb[0].mxu0
          %1427 = vmatprep.mubr.f32.mxu0 0.0
          %1428 = vmatmul.mubr.f32.gmra.mrb[0].mxu0 %v1315
          %v1429 = vpop.f32.mrb[0].mxu0
          %v1430 = vadd.f32 0.0, %v1429
          %v1431 = vpop.f32.mrb[0].mxu0
          %1432 = vmatprep.mubr.f32.mxu0 0.0
          %1433 = vmatmul.mubr.f32.gmra.mrb[0].mxu0 %v1316
          %v1434 = vpop.f32.mrb[0].mxu0
          %v1435 = vadd.f32 0.0, %v1434
          %v1436 = vpop.f32.mrb[0].mxu0
          %1437 = vmatprep.mubr.f32.mxu0 0.0
          %1438 = vmatmul.mubr.f32.gmra.mrb[0].mxu0 %v1317
          %v1439 = vpop.f32.mrb[0].mxu0
          %v1440 = vadd.f32 0.0, %v1439
          %v1441 = vpop.f32.mrb[0].mxu0
          %1442 = vmatprep.mubr.f32.mxu0 0.0
          %1443 = vmatmul.mubr.f32.gmra.mrb[0].mxu0 %v1318
          %v1444 = vpop.f32.mrb[0].mxu0
          %v1445 = vadd.f32 0.0, %v1444
          %v1446 = vpop.f32.mrb[0].mxu0
          %1447 = vmatprep.mubr.f32.mxu0 0.0
          %1448 = vmatmul.mubr.f32.gmra.mrb[0].mxu0 %v1319
          %v1449 = vpop.f32.mrb[0].mxu0
          %v1450 = vadd.f32 0.0, %v1449
          %v1451 = vpop.f32.mrb[0].mxu0
          %1452 = vmatprep.mubr.f32.mxu0 0.0
          %1453 = vmatmul.mubr.f32.gmra.mrb[0].mxu0 %v1320
          %v1454 = vpop.f32.mrb[0].mxu0
          %v1455 = vadd.f32 0.0, %v1454
          %v1456 = vpop.f32.mrb[0].mxu0
          %1457 = vmatprep.mubr.f32.mxu0 0.0
          %1458 = vmatmul.mubr.f32.gmra.mrb[0].mxu0 %v1321
          %v1459 = vpop.f32.mrb[0].mxu0
          %v1460 = vadd.f32 0.0, %v1459
          %v1461 = vpop.f32.mrb[0].mxu0
          %1462 = vmatprep.mubr.f32.mxu0 0.0
          %1463 = vmatmul.mubr.f32.gmra.mrb[0].mxu0 %v1322
          %v1464 = vpop.f32.mrb[0].mxu0
          %v1465 = vadd.f32 0.0, %v1464
          %v1466 = vpop.f32.mrb[0].mxu0
          %1467 = vmatprep.mubr.f32.mxu0 0.0
          %1468 = vmatmul.mubr.f32.gmra.mrb[0].mxu0 %v1323
          %v1469 = vpop.f32.mrb[0].mxu0
          %v1470 = vadd.f32 0.0, %v1469
          %v1471 = vpop.f32.mrb[0].mxu0
          %1472 = vmatprep.mubr.f32.mxu0 0.0
          %1473 = vmatmul.mubr.f32.gmra.mrb[0].mxu0 %v1324
          %v1474 = vpop.f32.mrb[0].mxu0
          %v1475 = vadd.f32 0.0, %v1474
          %v1476 = vpop.f32.mrb[0].mxu0
          %1477 = vmatprep.mubr.f32.mxu0 0.0
          %1478 = vmatmul.mubr.f32.gmra.mrb[0].mxu0 %v1325
          %v1479 = vpop.f32.mrb[0].mxu0
          %v1480 = vadd.f32 0.0, %v1479
          %v1481 = vpop.f32.mrb[0].mxu0
          %1482 = vmatprep.mubr.f32.mxu0 0.0
          %1483 = vmatmul.mubr.f32.gmra.mrb[0].mxu0 %v1326
          %v1484 = vpop.f32.mrb[0].mxu0
          %v1485 = vadd.f32 0.0, %v1484
          %v1486 = vpop.f32.mrb[0].mxu0
          %1487 = vdwg.mxu0
          %v1488 = vld [vmem:[%s502] sm:$0xff]
          %v1489 = vld [vmem:[%s502 + $0x8] sm:$0xff]
          %v1490 = vld [vmem:[%s502 + $0x10] sm:$0xff]
          %v1491 = vld [vmem:[%s502 + $0x18] sm:$0xff]
          %v1492 = vld [vmem:[%s502 + $0x20] sm:$0xff]
          %v1493 = vld [vmem:[%s502 + $0x28] sm:$0xff]
          %v1494 = vld [vmem:[%s502 + $0x30] sm:$0xff]
          %v1495 = vld [vmem:[%s502 + $0x38] sm:$0xff]
          %v1496 = vld [vmem:[%s502 + $0x40] sm:$0xff]
          %v1497 = vld [vmem:[%s502 + $0x48] sm:$0xff]
          %v1498 = vld [vmem:[%s502 + $0x50] sm:$0xff]
          %v1499 = vld [vmem:[%s502 + $0x58] sm:$0xff]
          %v1500 = vld [vmem:[%s502 + $0x60] sm:$0xff]
          %v1501 = vld [vmem:[%s502 + $0x68] sm:$0xff]
          %v1502 = vld [vmem:[%s502 + $0x70] sm:$0xff]
          %v1503 = vld [vmem:[%s502 + $0x78] sm:$0xff]
          %1505 = vset.pattern.permute.xlu0 0
          %1506 = vperm.xlu0 %1505, %v1488
          %v1507 = vpop.permute.xlu0 %1506
          %1510 = vset.pattern.permute.xlu0 0
          %1511 = vperm.xlu0 %1510, %v1489
          %v1512 = vpop.permute.xlu0 %1511
          %1515 = vset.pattern.permute.xlu0 0
          %1516 = vperm.xlu0 %1515, %v1490
          %v1517 = vpop.permute.xlu0 %1516
          %1520 = vset.pattern.permute.xlu0 0
          %1521 = vperm.xlu0 %1520, %v1491
          %v1522 = vpop.permute.xlu0 %1521
          %1525 = vset.pattern.permute.xlu0 0
          %1526 = vperm.xlu0 %1525, %v1492
          %v1527 = vpop.permute.xlu0 %1526
          %1530 = vset.pattern.permute.xlu0 0
          %1531 = vperm.xlu0 %1530, %v1493
          %v1532 = vpop.permute.xlu0 %1531
          %1535 = vset.pattern.permute.xlu0 0
          %1536 = vperm.xlu0 %1535, %v1494
          %v1537 = vpop.permute.xlu0 %1536
          %1540 = vset.pattern.permute.xlu0 0
          %1541 = vperm.xlu0 %1540, %v1495
          %v1542 = vpop.permute.xlu0 %1541
          %1545 = vset.pattern.permute.xlu0 0
          %1546 = vperm.xlu0 %1545, %v1496
          %v1547 = vpop.permute.xlu0 %1546
          %1550 = vset.pattern.permute.xlu0 0
          %1551 = vperm.xlu0 %1550, %v1497
          %v1552 = vpop.permute.xlu0 %1551
          %1555 = vset.pattern.permute.xlu0 0
          %1556 = vperm.xlu0 %1555, %v1498
          %v1557 = vpop.permute.xlu0 %1556
          %1560 = vset.pattern.permute.xlu0 0
          %1561 = vperm.xlu0 %1560, %v1499
          %v1562 = vpop.permute.xlu0 %1561
          %1565 = vset.pattern.permute.xlu0 0
          %1566 = vperm.xlu0 %1565, %v1500
          %v1567 = vpop.permute.xlu0 %1566
          %1570 = vset.pattern.permute.xlu0 0
          %1571 = vperm.xlu0 %1570, %v1501
          %v1572 = vpop.permute.xlu0 %1571
          %1575 = vset.pattern.permute.xlu0 0
          %1576 = vperm.xlu0 %1575, %v1502
          %v1577 = vpop.permute.xlu0 %1576
          %1580 = vset.pattern.permute.xlu0 0
          %1581 = vperm.xlu0 %1580, %v1503
          %v1582 = vpop.permute.xlu0 %1581
          %v1584 = vmul.f32 %v1410, %v1507
          %v1585 = vmul.f32 %v1415, %v1512
          %v1586 = vmul.f32 %v1420, %v1517
          %v1587 = vmul.f32 %v1425, %v1522
          %v1588 = vmul.f32 %v1430, %v1527
          %v1589 = vmul.f32 %v1435, %v1532
          %v1590 = vmul.f32 %v1440, %v1537
          %v1591 = vmul.f32 %v1445, %v1542
          %v1592 = vmul.f32 %v1450, %v1547
          %v1593 = vmul.f32 %v1455, %v1552
          %v1594 = vmul.f32 %v1460, %v1557
          %v1595 = vmul.f32 %v1465, %v1562
          %v1596 = vmul.f32 %v1470, %v1567
          %v1597 = vmul.f32 %v1475, %v1572
          %v1598 = vmul.f32 %v1480, %v1577
          %v1599 = vmul.f32 %v1485, %v1582
          %v1600 = vld [vmem:[%s426] sm:$0xf]
          %v1601 = vld [vmem:[%s426 + $0x4] sm:$0xf]
          %v1602 = vld [vmem:[%s426 + $0x8] sm:$0xf]
          %v1603 = vld [vmem:[%s426 + $0xc] sm:$0xf]
          %v1604 = vld [vmem:[%s426 + $0x10] sm:$0xf]
          %v1605 = vld [vmem:[%s426 + $0x14] sm:$0xf]
          %v1606 = vld [vmem:[%s426 + $0x18] sm:$0xf]
          %v1607 = vld [vmem:[%s426 + $0x1c] sm:$0xf]
          %v1608 = vld [vmem:[%s426 + $0x20] sm:$0xf]
          %v1609 = vld [vmem:[%s426 + $0x24] sm:$0xf]
          %v1610 = vld [vmem:[%s426 + $0x28] sm:$0xf]
          %v1611 = vld [vmem:[%s426 + $0x2c] sm:$0xf]
          %v1612 = vld [vmem:[%s426 + $0x30] sm:$0xf]
          %v1613 = vld [vmem:[%s426 + $0x34] sm:$0xf]
          %v1614 = vld [vmem:[%s426 + $0x38] sm:$0xf]
          %v1615 = vld [vmem:[%s426 + $0x3c] sm:$0xf]
          %v1616 = vld [vmem:[#allocation9] sm:$0xf]
          %v1617 = vld [vmem:[#allocation9 + $0x4] sm:$0xf]
          %v1618 = vld [vmem:[#allocation9 + $0x8] sm:$0xf]
          %v1619 = vld [vmem:[#allocation9 + $0xc] sm:$0xf]
          %v1620 = vld [vmem:[#allocation9 + $0x10] sm:$0xf]
          %v1621 = vld [vmem:[#allocation9 + $0x14] sm:$0xf]
          %v1622 = vld [vmem:[#allocation9 + $0x18] sm:$0xf]
          %v1623 = vld [vmem:[#allocation9 + $0x1c] sm:$0xf]
          %v1624 = vld [vmem:[#allocation9 + $0x20] sm:$0xf]
          %v1625 = vld [vmem:[#allocation9 + $0x24] sm:$0xf]
          %v1626 = vld [vmem:[#allocation9 + $0x28] sm:$0xf]
          %v1627 = vld [vmem:[#allocation9 + $0x2c] sm:$0xf]
          %v1628 = vld [vmem:[#allocation9 + $0x30] sm:$0xf]
          %v1629 = vld [vmem:[#allocation9 + $0x34] sm:$0xf]
          %v1630 = vld [vmem:[#allocation9 + $0x38] sm:$0xf]
          %v1631 = vld [vmem:[#allocation9 + $0x3c] sm:$0xf]
          %v1648 = vunpack.c.l.b16 %v1600
          %v1649 = vunpack.c.l.b16 %v1601
          %v1650 = vunpack.c.l.b16 %v1602
          %v1651 = vunpack.c.l.b16 %v1603
          %v1652 = vunpack.c.l.b16 %v1604
          %v1653 = vunpack.c.l.b16 %v1605
          %v1654 = vunpack.c.l.b16 %v1606
          %v1655 = vunpack.c.l.b16 %v1607
          %v1656 = vunpack.c.l.b16 %v1608
          %v1657 = vunpack.c.l.b16 %v1609
          %v1658 = vunpack.c.l.b16 %v1610
          %v1659 = vunpack.c.l.b16 %v1611
          %v1660 = vunpack.c.l.b16 %v1612
          %v1661 = vunpack.c.l.b16 %v1613
          %v1662 = vunpack.c.l.b16 %v1614
          %v1663 = vunpack.c.l.b16 %v1615
          %v1664 = vpack.c.b16 %v1649, %v1648
          %v1665 = vpack.c.b16 %v1651, %v1650
          %v1666 = vpack.c.b16 %v1653, %v1652
          %v1667 = vpack.c.b16 %v1655, %v1654
          %v1668 = vpack.c.b16 %v1657, %v1656
          %v1669 = vpack.c.b16 %v1659, %v1658
          %v1670 = vpack.c.b16 %v1661, %v1660
          %v1671 = vpack.c.b16 %v1663, %v1662
          %v1696 = vunpack.c.l.b16 %v1616
          %v1697 = vunpack.c.l.b16 %v1617
          %v1698 = vunpack.c.l.b16 %v1618
          %v1699 = vunpack.c.l.b16 %v1619
          %v1700 = vunpack.c.l.b16 %v1620
          %v1701 = vunpack.c.l.b16 %v1621
          %v1702 = vunpack.c.l.b16 %v1622
          %v1703 = vunpack.c.l.b16 %v1623
          %v1704 = vunpack.c.l.b16 %v1624
          %v1705 = vunpack.c.l.b16 %v1625
          %v1706 = vunpack.c.l.b16 %v1626
          %v1707 = vunpack.c.l.b16 %v1627
          %v1708 = vunpack.c.l.b16 %v1628
          %v1709 = vunpack.c.l.b16 %v1629
          %v1710 = vunpack.c.l.b16 %v1630
          %v1711 = vunpack.c.l.b16 %v1631
          %v1712 = vpack.c.b16 %v1697, %v1696
          %v1713 = vpack.c.b16 %v1699, %v1698
          %v1714 = vpack.c.b16 %v1701, %v1700
          %v1715 = vpack.c.b16 %v1703, %v1702
          %v1716 = vpack.c.b16 %v1705, %v1704
          %v1717 = vpack.c.b16 %v1707, %v1706
          %v1718 = vpack.c.b16 %v1709, %v1708
          %v1719 = vpack.c.b16 %v1711, %v1710
          %1728 = vmatprep.subr.bf16.mxu0 0
          %1729 = vmatpush1.bf16.msra.mxu0 %v1712
          %1730 = vmatprep.subr.bf16.mxu0 0
          %1731 = vmatpush1.bf16.msra.mxu0 %v1713
          %1732 = vmatprep.subr.bf16.mxu0 0
          %1733 = vmatpush1.bf16.msra.mxu0 %v1714
          %1734 = vmatprep.subr.bf16.mxu0 0
          %1735 = vmatpush1.bf16.msra.mxu0 %v1715
          %1736 = vmatprep.subr.bf16.mxu0 0
          %1737 = vmatpush1.bf16.msra.mxu0 %v1716
          %1738 = vmatprep.subr.bf16.mxu0 0
          %1739 = vmatpush1.bf16.msra.mxu0 %v1717
          %1740 = vmatprep.subr.bf16.mxu0 0
          %1741 = vmatpush1.bf16.msra.mxu0 %v1718
          %1742 = vmatprep.subr.bf16.mxu0 0
          %1743 = vmatpush1.bf16.msra.mxu0 %v1719
          %1744 = vmatprep.subr.bf16.mxu0 0
          %1745 = vmatpush1.bf16.msra.mxu0 0
          %1746 = vmatprep.subr.bf16.mxu0 0
          %1747 = vmatpush1.bf16.msra.mxu0 0
          %1748 = vmatprep.subr.bf16.mxu0 0
          %1749 = vmatpush1.bf16.msra.mxu0 0
          %1750 = vmatprep.subr.bf16.mxu0 0
          %1751 = vmatpush1.bf16.msra.mxu0 0
          %1752 = vmatprep.subr.bf16.mxu0 0
          %1753 = vmatpush1.bf16.msra.mxu0 0
          %1754 = vmatprep.subr.bf16.mxu0 0
          %1755 = vmatpush1.bf16.msra.mxu0 0
          %1756 = vmatprep.subr.bf16.mxu0 0
          %1757 = vmatpush1.bf16.msra.mxu0 0
          %1758 = vmatprep.subr.bf16.mxu0 0
          %1759 = vmatpush1.bf16.msra.mxu0 0
          %1760 = vmatprep.mubr.bf16.mxu0 0
          %1761 = vmatmul.mubr.bf16.gmra.mrb[0].mxu0 %v1664
          %v1762 = vpop.f32.mrb[0].mxu0
          %v1763 = vadd.f32 0.0, %v1762
          %v1764 = vpop.f32.mrb[0].mxu0
          %v1765 = vpop.f32.mrb[0].mxu0
          %v1766 = vadd.f32 0.0, %v1765
          %v1767 = vpop.f32.mrb[0].mxu0
          %1768 = vmatprep.mubr.bf16.mxu0 0
          %1769 = vmatmul.mubr.bf16.gmra.mrb[0].mxu0 %v1665
          %v1770 = vpop.f32.mrb[0].mxu0
          %v1771 = vadd.f32 0.0, %v1770
          %v1772 = vpop.f32.mrb[0].mxu0
          %v1773 = vpop.f32.mrb[0].mxu0
          %v1774 = vadd.f32 0.0, %v1773
          %v1775 = vpop.f32.mrb[0].mxu0
          %1776 = vmatprep.mubr.bf16.mxu0 0
          %1777 = vmatmul.mubr.bf16.gmra.mrb[0].mxu0 %v1666
          %v1778 = vpop.f32.mrb[0].mxu0
          %v1779 = vadd.f32 0.0, %v1778
          %v1780 = vpop.f32.mrb[0].mxu0
          %v1781 = vpop.f32.mrb[0].mxu0
          %v1782 = vadd.f32 0.0, %v1781
          %v1783 = vpop.f32.mrb[0].mxu0
          %1784 = vmatprep.mubr.bf16.mxu0 0
          %1785 = vmatmul.mubr.bf16.gmra.mrb[0].mxu0 %v1667
          %v1786 = vpop.f32.mrb[0].mxu0
          %v1787 = vadd.f32 0.0, %v1786
          %v1788 = vpop.f32.mrb[0].mxu0
          %v1789 = vpop.f32.mrb[0].mxu0
          %v1790 = vadd.f32 0.0, %v1789
          %v1791 = vpop.f32.mrb[0].mxu0
          %1792 = vmatprep.mubr.bf16.mxu0 0
          %1793 = vmatmul.mubr.bf16.gmra.mrb[0].mxu0 %v1668
          %v1794 = vpop.f32.mrb[0].mxu0
          %v1795 = vadd.f32 0.0, %v1794
          %v1796 = vpop.f32.mrb[0].mxu0
          %v1797 = vpop.f32.mrb[0].mxu0
          %v1798 = vadd.f32 0.0, %v1797
          %v1799 = vpop.f32.mrb[0].mxu0
          %1800 = vmatprep.mubr.bf16.mxu0 0
          %1801 = vmatmul.mubr.bf16.gmra.mrb[0].mxu0 %v1669
          %v1802 = vpop.f32.mrb[0].mxu0
          %v1803 = vadd.f32 0.0, %v1802
          %v1804 = vpop.f32.mrb[0].mxu0
          %v1805 = vpop.f32.mrb[0].mxu0
          %v1806 = vadd.f32 0.0, %v1805
          %v1807 = vpop.f32.mrb[0].mxu0
          %1808 = vmatprep.mubr.bf16.mxu0 0
          %1809 = vmatmul.mubr.bf16.gmra.mrb[0].mxu0 %v1670
          %v1810 = vpop.f32.mrb[0].mxu0
          %v1811 = vadd.f32 0.0, %v1810
          %v1812 = vpop.f32.mrb[0].mxu0
          %v1813 = vpop.f32.mrb[0].mxu0
          %v1814 = vadd.f32 0.0, %v1813
          %v1815 = vpop.f32.mrb[0].mxu0
          %1816 = vmatprep.mubr.bf16.mxu0 0
          %1817 = vmatmul.mubr.bf16.gmra.mrb[0].mxu0 %v1671
          %v1818 = vpop.f32.mrb[0].mxu0
          %v1819 = vadd.f32 0.0, %v1818
          %v1820 = vpop.f32.mrb[0].mxu0
          %v1821 = vpop.f32.mrb[0].mxu0
          %v1822 = vadd.f32 0.0, %v1821
          %v1823 = vpop.f32.mrb[0].mxu0
          %1824 = vdwg.mxu0
          %v1825 = vld [vmem:[%s509] sm:$0xff]
          %v1826 = vld [vmem:[%s509 + $0x8] sm:$0xff]
          %v1827 = vld [vmem:[%s509 + $0x10] sm:$0xff]
          %v1828 = vld [vmem:[%s509 + $0x18] sm:$0xff]
          %v1829 = vld [vmem:[%s509 + $0x20] sm:$0xff]
          %v1830 = vld [vmem:[%s509 + $0x28] sm:$0xff]
          %v1831 = vld [vmem:[%s509 + $0x30] sm:$0xff]
          %v1832 = vld [vmem:[%s509 + $0x38] sm:$0xff]
          %v1833 = vld [vmem:[%s509 + $0x40] sm:$0xff]
          %v1834 = vld [vmem:[%s509 + $0x48] sm:$0xff]
          %v1835 = vld [vmem:[%s509 + $0x50] sm:$0xff]
          %v1836 = vld [vmem:[%s509 + $0x58] sm:$0xff]
          %v1837 = vld [vmem:[%s509 + $0x60] sm:$0xff]
          %v1838 = vld [vmem:[%s509 + $0x68] sm:$0xff]
          %v1839 = vld [vmem:[%s509 + $0x70] sm:$0xff]
          %v1840 = vld [vmem:[%s509 + $0x78] sm:$0xff]
          %v1841 = vpack.c.bf16 %v1826, %v1825
          %v1842 = vpack.c.bf16 %v1828, %v1827
          %v1843 = vpack.c.bf16 %v1830, %v1829
          %v1844 = vpack.c.bf16 %v1832, %v1831
          %v1845 = vpack.c.bf16 %v1834, %v1833
          %v1846 = vpack.c.bf16 %v1836, %v1835
          %v1847 = vpack.c.bf16 %v1838, %v1837
          %v1848 = vpack.c.bf16 %v1840, %v1839
          %v1849 = vld [vmem:[#allocation11] sm:$0xf]
          %v1850 = vld [vmem:[#allocation11 + $0x4] sm:$0xf]
          %v1851 = vld [vmem:[#allocation11 + $0x8] sm:$0xf]
          %v1852 = vld [vmem:[#allocation11 + $0xc] sm:$0xf]
          %v1853 = vld [vmem:[#allocation11 + $0x10] sm:$0xf]
          %v1854 = vld [vmem:[#allocation11 + $0x14] sm:$0xf]
          %v1855 = vld [vmem:[#allocation11 + $0x18] sm:$0xf]
          %v1856 = vld [vmem:[#allocation11 + $0x1c] sm:$0xf]
          %v1857 = vld [vmem:[#allocation11 + $0x20] sm:$0xf]
          %v1858 = vld [vmem:[#allocation11 + $0x24] sm:$0xf]
          %v1859 = vld [vmem:[#allocation11 + $0x28] sm:$0xf]
          %v1860 = vld [vmem:[#allocation11 + $0x2c] sm:$0xf]
          %v1861 = vld [vmem:[#allocation11 + $0x30] sm:$0xf]
          %v1862 = vld [vmem:[#allocation11 + $0x34] sm:$0xf]
          %v1863 = vld [vmem:[#allocation11 + $0x38] sm:$0xf]
          %v1864 = vld [vmem:[#allocation11 + $0x3c] sm:$0xf]
          %v1865 = vld [vmem:[%s8] sm:$0x1]
          %v1867 = vlaneseq
          %v1868 = vshrl.u32 %v1867, 7
          %v1869 = vsub.s32 0, %v1868
          %v1870 = vrot.slane %v1865, %v1869
          %v1888 = vunpack.c.l.b16 %v1849
          %v1889 = vunpack.c.l.b16 %v1850
          %v1890 = vunpack.c.l.b16 %v1851
          %v1891 = vunpack.c.l.b16 %v1852
          %v1892 = vunpack.c.l.b16 %v1853
          %v1893 = vunpack.c.l.b16 %v1854
          %v1894 = vunpack.c.l.b16 %v1855
          %v1895 = vunpack.c.l.b16 %v1856
          %v1896 = vunpack.c.l.b16 %v1857
          %v1897 = vunpack.c.l.b16 %v1858
          %v1898 = vunpack.c.l.b16 %v1859
          %v1899 = vunpack.c.l.b16 %v1860
          %v1900 = vunpack.c.l.b16 %v1861
          %v1901 = vunpack.c.l.b16 %v1862
          %v1902 = vunpack.c.l.b16 %v1863
          %v1903 = vunpack.c.l.b16 %v1864
          %v1904 = vpack.c.b16 %v1889, %v1888
          %v1905 = vpack.c.b16 %v1891, %v1890
          %v1906 = vpack.c.b16 %v1893, %v1892
          %v1907 = vpack.c.b16 %v1895, %v1894
          %v1908 = vpack.c.b16 %v1897, %v1896
          %v1909 = vpack.c.b16 %v1899, %v1898
          %v1910 = vpack.c.b16 %v1901, %v1900
          %v1911 = vpack.c.b16 %v1903, %v1902
          %1920 = vmatprep.subr.bf16.mxu0 0
          %1921 = vmatpush1.bf16.msra.mxu0 %v1904
          %1922 = vmatprep.subr.bf16.mxu0 0
          %1923 = vmatpush1.bf16.msra.mxu0 %v1905
          %1924 = vmatprep.subr.bf16.mxu0 0
          %1925 = vmatpush1.bf16.msra.mxu0 %v1906
          %1926 = vmatprep.subr.bf16.mxu0 0
          %1927 = vmatpush1.bf16.msra.mxu0 %v1907
          %1928 = vmatprep.subr.bf16.mxu0 0
          %1929 = vmatpush1.bf16.msra.mxu0 %v1908
          %1930 = vmatprep.subr.bf16.mxu0 0
          %1931 = vmatpush1.bf16.msra.mxu0 %v1909
          %1932 = vmatprep.subr.bf16.mxu0 0
          %1933 = vmatpush1.bf16.msra.mxu0 %v1910
          %1934 = vmatprep.subr.bf16.mxu0 0
          %1935 = vmatpush1.bf16.msra.mxu0 %v1911
          %1936 = vmatprep.subr.bf16.mxu0 0
          %1937 = vmatpush1.bf16.msra.mxu0 0
          %1938 = vmatprep.subr.bf16.mxu0 0
          %1939 = vmatpush1.bf16.msra.mxu0 0
          %1940 = vmatprep.subr.bf16.mxu0 0
          %1941 = vmatpush1.bf16.msra.mxu0 0
          %1942 = vmatprep.subr.bf16.mxu0 0
          %1943 = vmatpush1.bf16.msra.mxu0 0
          %1944 = vmatprep.subr.bf16.mxu0 0
          %1945 = vmatpush1.bf16.msra.mxu0 0
          %1946 = vmatprep.subr.bf16.mxu0 0
          %1947 = vmatpush1.bf16.msra.mxu0 0
          %1948 = vmatprep.subr.bf16.mxu0 0
          %1949 = vmatpush1.bf16.msra.mxu0 0
          %1950 = vmatprep.subr.bf16.mxu0 0
          %1951 = vmatpush1.bf16.msra.mxu0 0
          %1952 = vmatprep.mubr.bf16.mxu0 0
          %1953 = vmatmul.mubr.bf16.gmra.mrb[0].mxu0 %v1841
          %v1954 = vpop.f32.mrb[0].mxu0
          %v1955 = vadd.f32 %v1870, %v1954
          %v1956 = vpop.f32.mrb[0].mxu0
          %v1957 = vpop.f32.mrb[0].mxu0
          %v1958 = vadd.f32 %v1870, %v1957
          %v1959 = vpop.f32.mrb[0].mxu0
          %1960 = vmatprep.mubr.bf16.mxu0 0
          %1961 = vmatmul.mubr.bf16.gmra.mrb[0].mxu0 %v1842
          %v1962 = vpop.f32.mrb[0].mxu0
          %v1963 = vadd.f32 %v1870, %v1962
          %v1964 = vpop.f32.mrb[0].mxu0
          %v1965 = vpop.f32.mrb[0].mxu0
          %v1966 = vadd.f32 %v1870, %v1965
          %v1967 = vpop.f32.mrb[0].mxu0
          %1968 = vmatprep.mubr.bf16.mxu0 0
          %1969 = vmatmul.mubr.bf16.gmra.mrb[0].mxu0 %v1843
          %v1970 = vpop.f32.mrb[0].mxu0
          %v1971 = vadd.f32 %v1870, %v1970
          %v1972 = vpop.f32.mrb[0].mxu0
          %v1973 = vpop.f32.mrb[0].mxu0
          %v1974 = vadd.f32 %v1870, %v1973
          %v1975 = vpop.f32.mrb[0].mxu0
          %1976 = vmatprep.mubr.bf16.mxu0 0
          %1977 = vmatmul.mubr.bf16.gmra.mrb[0].mxu0 %v1844
          %v1978 = vpop.f32.mrb[0].mxu0
          %v1979 = vadd.f32 %v1870, %v1978
          %v1980 = vpop.f32.mrb[0].mxu0
          %v1981 = vpop.f32.mrb[0].mxu0
          %v1982 = vadd.f32 %v1870, %v1981
          %v1983 = vpop.f32.mrb[0].mxu0
          %1984 = vmatprep.mubr.bf16.mxu0 0
          %1985 = vmatmul.mubr.bf16.gmra.mrb[0].mxu0 %v1845
          %v1986 = vpop.f32.mrb[0].mxu0
          %v1987 = vadd.f32 %v1870, %v1986
          %v1988 = vpop.f32.mrb[0].mxu0
          %v1989 = vpop.f32.mrb[0].mxu0
          %v1990 = vadd.f32 %v1870, %v1989
          %v1991 = vpop.f32.mrb[0].mxu0
          %1992 = vmatprep.mubr.bf16.mxu0 0
          %1993 = vmatmul.mubr.bf16.gmra.mrb[0].mxu0 %v1846
          %v1994 = vpop.f32.mrb[0].mxu0
          %v1995 = vadd.f32 %v1870, %v1994
          %v1996 = vpop.f32.mrb[0].mxu0
          %v1997 = vpop.f32.mrb[0].mxu0
          %v1998 = vadd.f32 %v1870, %v1997
          %v1999 = vpop.f32.mrb[0].mxu0
          %2000 = vmatprep.mubr.bf16.mxu0 0
          %2001 = vmatmul.mubr.bf16.gmra.mrb[0].mxu0 %v1847
          %v2002 = vpop.f32.mrb[0].mxu0
          %v2003 = vadd.f32 %v1870, %v2002
          %v2004 = vpop.f32.mrb[0].mxu0
          %v2005 = vpop.f32.mrb[0].mxu0
          %v2006 = vadd.f32 %v1870, %v2005
          %v2007 = vpop.f32.mrb[0].mxu0
          %2008 = vmatprep.mubr.bf16.mxu0 0
          %2009 = vmatmul.mubr.bf16.gmra.mrb[0].mxu0 %v1848
          %v2010 = vpop.f32.mrb[0].mxu0
          %v2011 = vadd.f32 %v1870, %v2010
          %v2012 = vpop.f32.mrb[0].mxu0
          %v2013 = vpop.f32.mrb[0].mxu0
          %v2014 = vadd.f32 %v1870, %v2013
          %v2015 = vpop.f32.mrb[0].mxu0
          %2016 = vdwg.mxu0
          %v2017 = vxor.u32 %v1955, 2147483648
          %v2018 = vxor.u32 %v1958, 2147483648
          %v2019 = vxor.u32 %v1963, 2147483648
          %v2020 = vxor.u32 %v1966, 2147483648
          %v2021 = vxor.u32 %v1971, 2147483648
          %v2022 = vxor.u32 %v1974, 2147483648
          %v2023 = vxor.u32 %v1979, 2147483648
          %v2024 = vxor.u32 %v1982, 2147483648
          %v2025 = vxor.u32 %v1987, 2147483648
          %v2026 = vxor.u32 %v1990, 2147483648
          %v2027 = vxor.u32 %v1995, 2147483648
          %v2028 = vxor.u32 %v1998, 2147483648
          %v2029 = vxor.u32 %v2003, 2147483648
          %v2030 = vxor.u32 %v2006, 2147483648
          %v2031 = vxor.u32 %v2011, 2147483648
          %v2032 = vxor.u32 %v2014, 2147483648
          %v2033 = vmul.f32 %v2017, 1.442695
          %v2034 = vpow.pop %v2033
          %v2035 = vmul.f32 %v2018, 1.442695
          %v2036 = vpow.pop %v2035
          %v2037 = vmul.f32 %v2019, 1.442695
          %v2038 = vpow.pop %v2037
          %v2039 = vmul.f32 %v2020, 1.442695
          %v2040 = vpow.pop %v2039
          %v2041 = vmul.f32 %v2021, 1.442695
          %v2042 = vpow.pop %v2041
          %v2043 = vmul.f32 %v2022, 1.442695
          %v2044 = vpow.pop %v2043
          %v2045 = vmul.f32 %v2023, 1.442695
          %v2046 = vpow.pop %v2045
          %v2047 = vmul.f32 %v2024, 1.442695
          %v2048 = vpow.pop %v2047
          %v2049 = vmul.f32 %v2025, 1.442695
          %v2050 = vpow.pop %v2049
          %v2051 = vmul.f32 %v2026, 1.442695
          %v2052 = vpow.pop %v2051
          %v2053 = vmul.f32 %v2027, 1.442695
          %v2054 = vpow.pop %v2053
          %v2055 = vmul.f32 %v2028, 1.442695
          %v2056 = vpow.pop %v2055
          %v2057 = vmul.f32 %v2029, 1.442695
          %v2058 = vpow.pop %v2057
          %v2059 = vmul.f32 %v2030, 1.442695
          %v2060 = vpow.pop %v2059
          %v2061 = vmul.f32 %v2031, 1.442695
          %v2062 = vpow.pop %v2061
          %v2063 = vmul.f32 %v2032, 1.442695
          %v2064 = vpow.pop %v2063
          %v2065 = vadd.f32 %v2034, 1.0
          %v2066 = vadd.f32 %v2036, 1.0
          %v2067 = vadd.f32 %v2038, 1.0
          %v2068 = vadd.f32 %v2040, 1.0
          %v2069 = vadd.f32 %v2042, 1.0
          %v2070 = vadd.f32 %v2044, 1.0
          %v2071 = vadd.f32 %v2046, 1.0
          %v2072 = vadd.f32 %v2048, 1.0
          %v2073 = vadd.f32 %v2050, 1.0
          %v2074 = vadd.f32 %v2052, 1.0
          %v2075 = vadd.f32 %v2054, 1.0
          %v2076 = vadd.f32 %v2056, 1.0
          %v2077 = vadd.f32 %v2058, 1.0
          %v2078 = vadd.f32 %v2060, 1.0
          %v2079 = vadd.f32 %v2062, 1.0
          %v2080 = vadd.f32 %v2064, 1.0
          %v2081 = vrcp.pop %v2065
          %v2082 = vmul.f32 1.0, %v2081
          %v2083 = vrcp.pop %v2066
          %v2084 = vmul.f32 1.0, %v2083
          %v2085 = vrcp.pop %v2067
          %v2086 = vmul.f32 1.0, %v2085
          %v2087 = vrcp.pop %v2068
          %v2088 = vmul.f32 1.0, %v2087
          %v2089 = vrcp.pop %v2069
          %v2090 = vmul.f32 1.0, %v2089
          %v2091 = vrcp.pop %v2070
          %v2092 = vmul.f32 1.0, %v2091
          %v2093 = vrcp.pop %v2071
          %v2094 = vmul.f32 1.0, %v2093
          %v2095 = vrcp.pop %v2072
          %v2096 = vmul.f32 1.0, %v2095
          %v2097 = vrcp.pop %v2073
          %v2098 = vmul.f32 1.0, %v2097
          %v2099 = vrcp.pop %v2074
          %v2100 = vmul.f32 1.0, %v2099
          %v2101 = vrcp.pop %v2075
          %v2102 = vmul.f32 1.0, %v2101
          %v2103 = vrcp.pop %v2076
          %v2104 = vmul.f32 1.0, %v2103
          %v2105 = vrcp.pop %v2077
          %v2106 = vmul.f32 1.0, %v2105
          %v2107 = vrcp.pop %v2078
          %v2108 = vmul.f32 1.0, %v2107
          %v2109 = vrcp.pop %v2079
          %v2110 = vmul.f32 1.0, %v2109
          %v2111 = vrcp.pop %v2080
          %v2112 = vmul.f32 1.0, %v2111
          %v2113 = vadd.f32 %v1584, %v1763
          %v2114 = vadd.f32 %v1585, %v1766
          %v2115 = vadd.f32 %v1586, %v1771
          %v2116 = vadd.f32 %v1587, %v1774
          %v2117 = vadd.f32 %v1588, %v1779
          %v2118 = vadd.f32 %v1589, %v1782
          %v2119 = vadd.f32 %v1590, %v1787
          %v2120 = vadd.f32 %v1591, %v1790
          %v2121 = vadd.f32 %v1592, %v1795
          %v2122 = vadd.f32 %v1593, %v1798
          %v2123 = vadd.f32 %v1594, %v1803
          %v2124 = vadd.f32 %v1595, %v1806
          %v2125 = vadd.f32 %v1596, %v1811
          %v2126 = vadd.f32 %v1597, %v1814
          %v2127 = vadd.f32 %v1598, %v1819
          %v2128 = vadd.f32 %v1599, %v1822
          %v2129 = vmul.f32 %v2082, %v2113
          %v2130 = vmul.f32 %v2084, %v2114
          %v2131 = vmul.f32 %v2086, %v2115
          %v2132 = vmul.f32 %v2088, %v2116
          %v2133 = vmul.f32 %v2090, %v2117
          %v2134 = vmul.f32 %v2092, %v2118
          %v2135 = vmul.f32 %v2094, %v2119
          %v2136 = vmul.f32 %v2096, %v2120
          %v2137 = vmul.f32 %v2098, %v2121
          %v2138 = vmul.f32 %v2100, %v2122
          %v2139 = vmul.f32 %v2102, %v2123
          %v2140 = vmul.f32 %v2104, %v2124
          %v2141 = vmul.f32 %v2106, %v2125
          %v2142 = vmul.f32 %v2108, %v2126
          %v2143 = vmul.f32 %v2110, %v2127
          %v2144 = vmul.f32 %v2112, %v2128
          %v2145 = vsub.f32 1.0, %v2082
          %v2146 = vsub.f32 1.0, %v2084
          %v2147 = vsub.f32 1.0, %v2086
          %v2148 = vsub.f32 1.0, %v2088
          %v2149 = vsub.f32 1.0, %v2090
          %v2150 = vsub.f32 1.0, %v2092
          %v2151 = vsub.f32 1.0, %v2094
          %v2152 = vsub.f32 1.0, %v2096
          %v2153 = vsub.f32 1.0, %v2098
          %v2154 = vsub.f32 1.0, %v2100
          %v2155 = vsub.f32 1.0, %v2102
          %v2156 = vsub.f32 1.0, %v2104
          %v2157 = vsub.f32 1.0, %v2106
          %v2158 = vsub.f32 1.0, %v2108
          %v2159 = vsub.f32 1.0, %v2110
          %v2160 = vsub.f32 1.0, %v2112
          %v2161 = vmul.f32 %v2145, %v1825
          %v2162 = vmul.f32 %v2146, %v1826
          %v2163 = vmul.f32 %v2147, %v1827
          %v2164 = vmul.f32 %v2148, %v1828
          %v2165 = vmul.f32 %v2149, %v1829
          %v2166 = vmul.f32 %v2150, %v1830
          %v2167 = vmul.f32 %v2151, %v1831
          %v2168 = vmul.f32 %v2152, %v1832
          %v2169 = vmul.f32 %v2153, %v1833
          %v2170 = vmul.f32 %v2154, %v1834
          %v2171 = vmul.f32 %v2155, %v1835
          %v2172 = vmul.f32 %v2156, %v1836
          %v2173 = vmul.f32 %v2157, %v1837
          %v2174 = vmul.f32 %v2158, %v1838
          %v2175 = vmul.f32 %v2159, %v1839
          %v2176 = vmul.f32 %v2160, %v1840
          %v2177 = vadd.f32 %v2129, %v2161
          %v2178 = vadd.f32 %v2130, %v2162
          %v2179 = vadd.f32 %v2131, %v2163
          %v2180 = vadd.f32 %v2132, %v2164
          %v2181 = vadd.f32 %v2133, %v2165
          %v2182 = vadd.f32 %v2134, %v2166
          %v2183 = vadd.f32 %v2135, %v2167
          %v2184 = vadd.f32 %v2136, %v2168
          %v2185 = vadd.f32 %v2137, %v2169
          %v2186 = vadd.f32 %v2138, %v2170
          %v2187 = vadd.f32 %v2139, %v2171
          %v2188 = vadd.f32 %v2140, %v2172
          %v2189 = vadd.f32 %v2141, %v2173
          %v2190 = vadd.f32 %v2142, %v2174
          %v2191 = vadd.f32 %v2143, %v2175
          %v2192 = vadd.f32 %v2144, %v2176
          %v2193 = vmax.f32 %v2177, 0.0
          %v2194 = vmax.f32 %v2178, 0.0
          %v2195 = vmax.f32 %v2179, 0.0
          %v2196 = vmax.f32 %v2180, 0.0
          %v2197 = vmax.f32 %v2181, 0.0
          %v2198 = vmax.f32 %v2182, 0.0
          %v2199 = vmax.f32 %v2183, 0.0
          %v2200 = vmax.f32 %v2184, 0.0
          %v2201 = vmax.f32 %v2185, 0.0
          %v2202 = vmax.f32 %v2186, 0.0
          %v2203 = vmax.f32 %v2187, 0.0
          %v2204 = vmax.f32 %v2188, 0.0
          %v2205 = vmax.f32 %v2189, 0.0
          %v2206 = vmax.f32 %v2190, 0.0
          %v2207 = vmax.f32 %v2191, 0.0
          %v2208 = vmax.f32 %v2192, 0.0
          %2209 = vst [vmem:[%s491] sm:$0xff] %v2193
          %2210 = vst [vmem:[%s491 + $0x8] sm:$0xff] %v2194
          %2211 = vst [vmem:[%s491 + $0x10] sm:$0xff] %v2195
          %2212 = vst [vmem:[%s491 + $0x18] sm:$0xff] %v2196
          %2213 = vst [vmem:[%s491 + $0x20] sm:$0xff] %v2197
          %2214 = vst [vmem:[%s491 + $0x28] sm:$0xff] %v2198
          %2215 = vst [vmem:[%s491 + $0x30] sm:$0xff] %v2199
          %2216 = vst [vmem:[%s491 + $0x38] sm:$0xff] %v2200
          %2217 = vst [vmem:[%s491 + $0x40] sm:$0xff] %v2201
          %2218 = vst [vmem:[%s491 + $0x48] sm:$0xff] %v2202
          %2219 = vst [vmem:[%s491 + $0x50] sm:$0xff] %v2203
          %2220 = vst [vmem:[%s491 + $0x58] sm:$0xff] %v2204
          %2221 = vst [vmem:[%s491 + $0x60] sm:$0xff] %v2205
          %2222 = vst [vmem:[%s491 + $0x68] sm:$0xff] %v2206
          %2223 = vst [vmem:[%s491 + $0x70] sm:$0xff] %v2207
          %2224 = vst [vmem:[%s491 + $0x78] sm:$0xff] %v2208
        $region84: #{tpu_custom_call.1} parent=55 // pred_fallthru
          _
        %s2225 = sand.u32 %s264, 1
        %s2226 = scalar_lea.sflag [#allocation5], %s2225
        %s2227 = sand.u32 %s264, 1
        %s2228 = smul.addr %s2227, 128
        %s2229 = scalar_lea.vmem [#allocation12], %s2228
        // Predicated region
        $region85: #{tpu_custom_call.1} parent=55 // pred_check
          %p2230 = pneg %p274
        $region86: #{tpu_custom_call.1} parent=55 // pred_check_branch
          %2232 = sbr.rel (%p2230) target = $region88
        $region87: #{tpu_custom_call.1} parent=55 // pred_region
          %s2233 = smul.u32 16, %s34
          %s2235 = ssub.s32 2048, 2048
          %2236 = vsyncadd %s2226, %s2235
          %s2237 = smul.addr %s2233, 128
          %s2238 = scalar_lea.hbm %s9, %s2237
          %s2239 = sshll.u32 %s2229, 4
          %s2240 = int_to_ptr.vmem [resolvable:$true] %s2239
          %2245 = dma.vmem_to_hbm [thread:$0]  %s2240, 2048, %s2238, %s2226, 128, 128, 8
        $region88: #{tpu_custom_call.1} parent=55 // pred_fallthru
          _
      $region56: #{tpu_custom_call.1} parent=5 // pred_fallthru
        _
      %p2246 = scmp.le.s32.totalorder 2, %s25
      // Predicated region
      $region89: #{tpu_custom_call.1} parent=5 // pred_check
        %p2247 = pneg %p2246
      $region90: #{tpu_custom_call.1} parent=5 // pred_check_branch
        %2249 = sbr.rel (%p2247) target = $region92
      $region91: #{tpu_custom_call.1} parent=5 // pred_region
        %s2250 = ssub.s32 %s25, 2
        // Predicated region
        $region93: #{tpu_custom_call.1} parent=91 // pred_check
          %p2251 = pneg %p280
        $region94: #{tpu_custom_call.1} parent=91 // pred_check_branch
          %2253 = sbr.rel (%p2251) target = $region96
        $region95: #{tpu_custom_call.1} parent=91 // pred_region
          %s2254 = sand.u32 %s265, 1
          %s2255 = scalar_lea.sflag [#allocation5], %s2254
          %s2256 = sand.u32 %s265, 1
          %s2257 = smul.addr %s2256, 128
          %s2258 = scalar_lea.vmem [#allocation12], %s2257
          %2259 = dma.done %s2255, 2048
        $region96: #{tpu_custom_call.1} parent=91 // pred_fallthru
          _
      $region92: #{tpu_custom_call.1} parent=5 // pred_fallthru
        _
    $region6: #{tpu_custom_call.1} parent=1 // loop_footer
      %s29 = sadd.s32 1, %s25
    $region7: #{tpu_custom_call.1} parent=1 // loop_footer_branch
      %24 = sbr.rel target = $region3
    $region8: #{tpu_custom_call.1} parent=1 // loop_exit
      _
    %2260 = vsyncpa [#allocation4], 1
    %s2261 = scalar_lea.sflag [#allocation4], 1
    %2262 = vsyncpa %s2261, 1
    %2263 = vsyncpa [#allocation7], 1
    %s2264 = scalar_lea.sflag [#allocation7], 1
    %2265 = vsyncpa %s2264, 1
    %2266 = vsyncpa [#allocation10], 1
    %2267 = vsyncpa [#allocation5], 1
    %s2268 = scalar_lea.sflag [#allocation5], 1
    %2269 = vsyncpa %s2268, 1

</llo_original>
